<compile_context>
chip_gen: v5e
topology: v5e:2x2
jax: 0.10.0
libtpu: 0.0.40
codegen_flags: <defaults>
</compile_context>

<pallas_src>
import functools

import jax
import jax.numpy as jnp
from jax.experimental import pallas as pl
from jax.experimental.pallas import tpu as pltpu

BN_EPS = 1e-5
_INV_SQRT2 = 0.7071067811865476


@functools.lru_cache(maxsize=None)
def _vmem_limit_bytes():
    """~3/4 of physical VMEM: ~96 MiB on v5e/v6e (128 MiB), ~48 MiB on v7x (64 MiB)."""
    cap = 128 * 1024 * 1024
    try:
        info = pltpu.get_tpu_info()
        cap = int(getattr(info, "vmem_capacity_bytes", cap))
    except Exception:
        pass
    return max(16 * 1024 * 1024, (cap * 3) // 4)


def _mosaic(n_grid_axes):
    # "parallel" shards grid axes across v7x's two TensorCores; no-op on v5e/v6e.
    return pltpu.CompilerParams(
        dimension_semantics=("parallel",) * n_grid_axes,
        vmem_limit_bytes=_vmem_limit_bytes())


def _pick_row_tile(n_rows, target=512):
    """Largest row tile <= target that divides n_rows and is a multiple of 8."""
    if n_rows <= target:
        return n_rows
    start = target - (target % 8)
    for t in range(start, 7, -8):
        if n_rows % t == 0:
            return t
    return n_rows  # no clean divisor: single tile (block == full dim is always legal)


# ---- K1: fused QKV proj + attention + concat-head out-proj + residual + BN1 stats
def _attn_kernel(x_ref, wqkv_ref, bqkv_ref, wo_ref, bo_ref,
                 y_ref, s_ref, ss_ref, qkv_scr, *,
                 n_heads, d_model, approx_recip, compute_dtype):
    cd = compute_dtype
    dk = d_model // n_heads
    x32 = x_ref[...].astype(jnp.float32)          # residual kept in f32

    # Fused QKV projection (contraction width = d_model -> good MXU fill).
    # Attention scale is folded into W_Q / b_Q at pack time.
    qkv_scr[...] = jnp.dot(x32.astype(cd), wqkv_ref[...],
                           preferred_element_type=jnp.float32) + bqkv_ref[...]

    # Per-head scaled dot-product attention (static unroll over heads, slices are
    # VMEM-local: no HBM head-major relayout).
    ctx = []
    for h in range(n_heads):
        q_h = qkv_scr[:, h * dk:(h + 1) * dk].astype(cd)
        k_h = qkv_scr[:, d_model + h * dk:d_model + (h + 1) * dk].astype(cd)
        v_h = qkv_scr[:, 2 * d_model + h * dk:2 * d_model + (h + 1) * dk].astype(cd)
        # scores = q_h @ k_h^T (contraction over dk handled natively by the MXU)
        s = jax.lax.dot_general(q_h, k_h, (((1,), (1,)), ((), ())),
                                preferred_element_type=jnp.float32)      # (L, L)
        m = jnp.max(s, axis=-1, keepdims=True)
        e = jnp.exp(s - m)
        den = jnp.sum(e, axis=-1, keepdims=True)
        if approx_recip:
            p = e * pl.reciprocal(den, approx=True)   # divide on the EUP slot
        else:
            p = e / den
        ctx.append(jnp.dot(p.astype(cd), v_h,
                           preferred_element_type=jnp.float32))          # (L, dk)

    # Single concatenated-head output projection: one (L, D) @ (D, D) matmul
    # (contraction width D) instead of H dk-wide matmuls + cross-head reduce.
    ctx_cat = jnp.concatenate(ctx, axis=-1).astype(cd)                   # (L, D)
    proj = jnp.dot(ctx_cat, wo_ref[...], preferred_element_type=jnp.float32)
    y = x32 + proj + bo_ref[...]
    y_ref[...] = y.astype(y_ref.dtype)

    # BatchNorm partial statistics for this batch's rows (finalized in the wrapper).
    # TODO(synk): one-pass sum/sum^2 can cancel for large bs*q_len; a shifted or
    # Welford accumulation would be more robust.
    s_ref[...] = jnp.sum(y, axis=0, keepdims=True)
    ss_ref[...] = jnp.sum(y * y, axis=0, keepdims=True)
    # TODO(synk): for very long q_len add a flash-style key-tile grid axis
    # ("arbitrary") so the (L, L) score tiles stay bounded on v7x's 64 MiB VMEM.


# ---- K2: BN1 affine + FFN (exact-erf GELU) + residual + BN2 partial stats -----
def _ffn_kernel(y_ref, sc_ref, sh_ref, w1_ref, b1_ref, w2_ref, b2_ref,
                z_ref, s_ref, ss_ref, *, compute_dtype):
    y = y_ref[...].astype(jnp.float32) * sc_ref[...] + sh_ref[...]   # fused BN affine
    h = jnp.dot(y.astype(compute_dtype), w1_ref[...],
                preferred_element_type=jnp.float32) + b1_ref[...]
    # Exact erf GELU (matches nn.GELU default). If profiling shows this stage is
    # VALU-bound, the tanh approximation would move work to the (idle) EUP slot.
    h = 0.5 * h * (1.0 + jax.lax.erf(h * _INV_SQRT2))
    f = jnp.dot(h.astype(compute_dtype), w2_ref[...],
                preferred_element_type=jnp.float32) + b2_ref[...]
    z = y + f
    z_ref[...] = z.astype(z_ref.dtype)
    s_ref[...] = jnp.sum(z, axis=0, keepdims=True)
    ss_ref[...] = jnp.sum(z * z, axis=0, keepdims=True)


# ---- K3: final BN2 affine (lane-dense packed layout) --------------------------
def _norm_kernel(z_ref, sc_ref, sh_ref, o_ref):
    o_ref[...] = (z_ref[...].astype(jnp.float32) * sc_ref[...]
                  + sh_ref[...]).astype(o_ref.dtype)


def _bn_scale_shift(s_tot, ss_tot, n_rows, gamma, beta):
    # Convert (sum, sum of squares) to a fused affine: y*scale + shift.
    # Clamp the one-pass variance at 0 to guard against fp cancellation.
    mean = s_tot / n_rows
    var = jnp.maximum(ss_tot / n_rows - mean * mean, 0.0)
    inv_std = jax.lax.rsqrt(var + BN_EPS)
    scale = gamma * inv_std
    shift = beta - mean * scale
    return scale, shift


def tst_encoder_layer(src, params, n_heads, *, compute_dtype=jnp.bfloat16,
                      row_tile_target=512):
    bs, L, D = src.shape
    assert D % n_heads == 0
    dk = D // n_heads
    n_rows = bs * L
    f32 = jnp.float32
    cd = jnp.dtype(compute_dtype)
    approx = cd == jnp.dtype(jnp.bfloat16)

    # ---- pack weights: fuse QKV, fold attention scale into W_Q / b_Q ----------
    scale = dk ** -0.5
    wqkv = jnp.concatenate(
        [params["wq"] * scale, params["wk"], params["wv"]], axis=1).astype(cd)
    bqkv = jnp.concatenate(
        [params["bq"] * scale, params["bk"], params["bv"]], axis=1).astype(f32)
    wo = params["wo"].astype(cd)
    bo = params["bo"].astype(f32)
    w1 = params["w1"].astype(cd)
    b1 = params["b1"].astype(f32)
    w2 = params["w2"].astype(cd)
    b2 = params["b2"].astype(f32)
    F = w1.shape[1]

    x = src.astype(f32)   # residual stays f32; cast to cd only inside the kernel

    # ---- K1: fused QKV + attention + out-proj + residual + BN1 partial stats --
    # NOTE: grid=(bs,). For large bs*q_len a query-tile axis should be added so the
    # DMA pipeline has >=8 steps per core and both v7x TensorCores stay busy.
    y_pre, s1, ss1 = pl.pallas_call(
        functools.partial(_attn_kernel, n_heads=n_heads, d_model=D,
                          approx_recip=approx, compute_dtype=cd),
        out_shape=(jax.ShapeDtypeStruct((bs, L, D), cd),
                   jax.ShapeDtypeStruct((bs, 1, D), f32),
                   jax.ShapeDtypeStruct((bs, 1, D), f32)),
        grid=(bs,),
        in_specs=[pl.BlockSpec((None, L, D), lambda b: (b, 0, 0)),
                  pl.BlockSpec((D, 3 * D), lambda b: (0, 0)),
                  pl.BlockSpec((1, 3 * D), lambda b: (0, 0)),
                  pl.BlockSpec((D, D), lambda b: (0, 0)),
                  pl.BlockSpec((1, D), lambda b: (0, 0))],
        out_specs=(pl.BlockSpec((None, L, D), lambda b: (b, 0, 0)),
                   pl.BlockSpec((None, 1, D), lambda b: (b, 0, 0)),
                   pl.BlockSpec((None, 1, D), lambda b: (b, 0, 0))),
        scratch_shapes=[pltpu.VMEM((L, 3 * D), f32)],
        compiler_params=_mosaic(1),
    )(x, wqkv, bqkv, wo, bo)

    scale1, shift1 = _bn_scale_shift(
        jnp.sum(s1, axis=0), jnp.sum(ss1, axis=0), n_rows,
        params["g1"].astype(f32), params["be1"].astype(f32))

    # ---- K2: BN1 affine + FFN + residual + BN2 partial stats ------------------
    rt = _pick_row_tile(n_rows, row_tile_target)
    n_tiles = n_rows // rt
    y2 = y_pre.reshape(n_rows, D)
    z_pre, s2, ss2 = pl.pallas_call(
        functools.partial(_ffn_kernel, compute_dtype=cd),
        out_shape=(jax.ShapeDtypeStruct((n_rows, D), cd),
                   jax.ShapeDtypeStruct((n_tiles, 1, D), f32),
                   jax.ShapeDtypeStruct((n_tiles, 1, D), f32)),
        grid=(n_tiles,),
        in_specs=[pl.BlockSpec((rt, D), lambda i: (i, 0)),
                  pl.BlockSpec((1, D), lambda i: (0, 0)),
                  pl.BlockSpec((1, D), lambda i: (0, 0)),
                  pl.BlockSpec((D, F), lambda i: (0, 0)),
                  pl.BlockSpec((1, F), lambda i: (0, 0)),
                  pl.BlockSpec((F, D), lambda i: (0, 0)),
                  pl.BlockSpec((1, D), lambda i: (0, 0))],
        out_specs=(pl.BlockSpec((rt, D), lambda i: (i, 0)),
                   pl.BlockSpec((None, 1, D), lambda i: (i, 0, 0)),
                   pl.BlockSpec((None, 1, D), lambda i: (i, 0, 0))),
        compiler_params=_mosaic(1),
    )(y2, scale1, shift1, w1, b1, w2, b2)

    scale2, shift2 = _bn_scale_shift(
        jnp.sum(s2, axis=0), jnp.sum(ss2, axis=0), n_rows,
        params["g2"].astype(f32), params["be2"].astype(f32))

    # ---- K3: final BatchNorm affine, lane-dense packed when D < 128 -----------
    if D < 128 and 128 % D == 0 and n_rows % (128 // D) == 0:
        k_pack = 128 // D
    else:
        k_pack = 1
    rows_p = n_rows // k_pack
    z_p = z_pre.reshape(rows_p, k_pack * D)            # free contiguous reshape
    sc_p = jnp.tile(scale2, (1, k_pack))
    sh_p = jnp.tile(shift2, (1, k_pack))
    rt4 = _pick_row_tile(rows_p, row_tile_target)
    n_tiles4 = rows_p // rt4
    out = pl.pallas_call(
        _norm_kernel,
        out_shape=jax.ShapeDtypeStruct((rows_p, k_pack * D), f32),
        grid=(n_tiles4,),
        in_specs=[pl.BlockSpec((rt4, k_pack * D), lambda i: (i, 0)),
                  pl.BlockSpec((1, k_pack * D), lambda i: (0, 0)),
                  pl.BlockSpec((1, k_pack * D), lambda i: (0, 0))],
        out_specs=pl.BlockSpec((rt4, k_pack * D), lambda i: (i, 0)),
        compiler_params=_mosaic(1),
    )(z_p, sc_p, sh_p)

    return out.reshape(bs, L, D)


# ---------------- plain-JAX reference (pure f32, same math) --------------------
def reference(src, params, n_heads):
    bs, L, D = src.shape
    dk = D // n_heads
    x = src.reshape(bs * L, D)
    q = x @ params["wq"] + params["bq"]
    k = x @ params["wk"] + params["bk"]
    v = x @ params["wv"] + params["bv"]
    q = q.reshape(bs, L, n_heads, dk).transpose(0, 2, 1, 3)
    k = k.reshape(bs, L, n_heads, dk).transpose(0, 2, 1, 3)
    v = v.reshape(bs, L, n_heads, dk).transpose(0, 2, 1, 3)
    s = jnp.einsum("bhqd,bhkd->bhqk", q, k) * (dk ** -0.5)
    p = jax.nn.softmax(s, axis=-1)
    o = jnp.einsum("bhqk,bhkd->bhqd", p, v)
    o = o.transpose(0, 2, 1, 3).reshape(bs * L, D)
    y = x + (o @ params["wo"] + params["bo"])

    def bn(t, g, b):
        m = jnp.mean(t, axis=0, keepdims=True)
        var = jnp.mean((t - m) ** 2, axis=0, keepdims=True)
        return (t - m) / jnp.sqrt(var + BN_EPS) * g + b

    y = bn(y, params["g1"], params["be1"])
    h = y @ params["w1"] + params["b1"]
    h = 0.5 * h * (1.0 + jax.lax.erf(h * _INV_SQRT2))
    z = bn(y + (h @ params["w2"] + params["b2"]), params["g2"], params["be2"])
    return z.reshape(bs, L, D)


def init_params(key, d_model, n_heads, d_ff):
    ks = jax.random.split(key, 10)

    def linear(k, fan_in, fan_out):
        bound = 1.0 / (fan_in ** 0.5)
        kw, kb = jax.random.split(k)
        w = jax.random.uniform(kw, (fan_in, fan_out), jnp.float32, -bound, bound)
        b = jax.random.uniform(kb, (1, fan_out), jnp.float32, -bound, bound)
        return w, b

    wq, bq = linear(ks[0], d_model, d_model)
    wk, bk = linear(ks[1], d_model, d_model)
    wv, bv = linear(ks[2], d_model, d_model)
    wo, bo = linear(ks[3], d_model, d_model)
    w1, b1 = linear(ks[4], d_model, d_ff)
    w2, b2 = linear(ks[5], d_ff, d_model)
    g1 = 1.0 + 0.1 * jax.random.normal(ks[6], (1, d_model), jnp.float32)
    be1 = 0.1 * jax.random.normal(ks[7], (1, d_model), jnp.float32)
    g2 = 1.0 + 0.1 * jax.random.normal(ks[8], (1, d_model), jnp.float32)
    be2 = 0.1 * jax.random.normal(ks[9], (1, d_model), jnp.float32)
    return dict(wq=wq, bq=bq, wk=wk, bk=bk, wv=wv, bv=bv, wo=wo, bo=bo,
                g1=g1, be1=be1, w1=w1, b1=b1, w2=w2, b2=b2, g2=g2, be2=be2)


if __name__ == "__main__":
    bs, q_len, d_model, n_heads, d_ff = 2, 8, 32, 4, 64
    key = jax.random.PRNGKey(0)
    kx, kp = jax.random.split(key)
    src = jax.random.normal(kx, (bs, q_len, d_model), jnp.float32)
    params = init_params(kp, d_model, n_heads, d_ff)

    ref = reference(src, params, n_heads)

    # f32 compute path: tight check of the module semantics.
    fwd_f32 = jax.jit(functools.partial(tst_encoder_layer, n_heads=n_heads,
                                        compute_dtype=jnp.float32))
    out32 = fwd_f32(src, params)
    jax.block_until_ready(out32)
    assert out32.shape == (bs, q_len, d_model)
    assert jnp.allclose(out32, ref, atol=5e-4, rtol=5e-4), float(
        jnp.max(jnp.abs(out32 - ref)))

    # bf16 MXU-operand path (default, for v5e/v6e/v7x throughput): looser check.
    fwd_bf16 = jax.jit(functools.partial(tst_encoder_layer, n_heads=n_heads,
                                         compute_dtype=jnp.bfloat16))
    out16 = fwd_bf16(src, params)
    jax.block_until_ready(out16)
    assert out16.shape == (bs, q_len, d_model)
    assert jnp.allclose(out16, ref, atol=1.5e-1, rtol=1.5e-1), float(
        jnp.max(jnp.abs(out16 - ref)))

    print("KERNEL_OK")
</pallas_src>

<mosaic_0001>
module attributes {stable_mosaic.version = 11 : i64} {
  func.func @_attn_kernel(%arg0: i32, %arg1: memref<1x8x32xf32, #tpu.memory_space<vmem>>, %arg2: memref<32x96xf32, #tpu.memory_space<vmem>>, %arg3: memref<1x96xf32, #tpu.memory_space<vmem>>, %arg4: memref<32x32xf32, #tpu.memory_space<vmem>>, %arg5: memref<1x32xf32, #tpu.memory_space<vmem>>, %arg6: memref<1x8x32xf32, #tpu.memory_space<vmem>>, %arg7: memref<1x1x32xf32, #tpu.memory_space<vmem>>, %arg8: memref<1x1x32xf32, #tpu.memory_space<vmem>>, %arg9: memref<8x96xf32, #tpu.memory_space<vmem>>) attributes {dimension_semantics = [#tpu.dimension_semantics<parallel>], iteration_bounds = array<i64: 2>, scalar_prefetch = 0 : i64, scratch_operands = 1 : i64, tpu.core_type = #tpu.core_type<tc>, window_params = [{transform_indices = @transform_0, window_bounds = array<i64: 1, 8, 32>}, {pipeline_mode = #tpu.pipeline_mode<synchronous>, transform_indices = @transform_1, window_bounds = array<i64: 32, 96>}, {pipeline_mode = #tpu.pipeline_mode<synchronous>, transform_indices = @transform_2, window_bounds = array<i64: 1, 96>}, {pipeline_mode = #tpu.pipeline_mode<synchronous>, transform_indices = @transform_3, window_bounds = array<i64: 32, 32>}, {pipeline_mode = #tpu.pipeline_mode<synchronous>, transform_indices = @transform_4, window_bounds = array<i64: 1, 32>}, {transform_indices = @transform_5, window_bounds = array<i64: 1, 8, 32>}, {transform_indices = @transform_6, window_bounds = array<i64: 1, 1, 32>}, {transform_indices = @transform_7, window_bounds = array<i64: 1, 1, 32>}]} {
    %c0 = arith.constant 0 : index
    %c0_0 = arith.constant 0 : index
    %c0_1 = arith.constant 0 : index
    %0 = vector.load %arg1[%c0, %c0_0, %c0_1] : memref<1x8x32xf32, #tpu.memory_space<vmem>>, vector<1x8x32xf32>
    %1 = vector.shape_cast %0 : vector<1x8x32xf32> to vector<8x32xf32>
    %c0_2 = arith.constant 0 : index
    %c0_3 = arith.constant 0 : index
    %2 = vector.load %arg2[%c0_2, %c0_3] : memref<32x96xf32, #tpu.memory_space<vmem>>, vector<32x96xf32>
    %cst = arith.constant dense<0.000000e+00> : vector<8x96xf32>
    %3 = tpu.matmul %1, %2, %cst {dimension_numbers = #tpu.dot_dimension_numbers<[1], [0], [0], [1], [0, 0, 1, 1], [], []>} : vector<8x32xf32>, vector<32x96xf32>, vector<8x96xf32> -> vector<8x96xf32>
    %c0_4 = arith.constant 0 : index
    %c0_5 = arith.constant 0 : index
    %4 = vector.load %arg3[%c0_4, %c0_5] : memref<1x96xf32, #tpu.memory_space<vmem>>, vector<1x96xf32>
    %5 = vector.broadcast %4 : vector<1x96xf32> to vector<8x96xf32>
    %6 = arith.addf %3, %5 : vector<8x96xf32>
    %c0_6 = arith.constant 0 : index
    %c0_7 = arith.constant 0 : index
    %7 = vector.load %arg9[%c0_6, %c0_7] : memref<8x96xf32, #tpu.memory_space<vmem>>, vector<8x96xf32>
    tpu.vector_store %arg9[%c0_6, %c0_7], %6 {strides = array<i32>} : memref<8x96xf32, #tpu.memory_space<vmem>>, vector<8x96xf32>,
    %c0_8 = arith.constant 0 : index
    %c0_9 = arith.constant 0 : index
    %8 = vector.load %arg9[%c0_8, %c0_9] : memref<8x96xf32, #tpu.memory_space<vmem>>, vector<8x8xf32>
    %c0_10 = arith.constant 0 : index
    %c32 = arith.constant 32 : index
    %9 = vector.load %arg9[%c0_10, %c32] : memref<8x96xf32, #tpu.memory_space<vmem>>, vector<8x8xf32>
    %c0_11 = arith.constant 0 : index
    %c64 = arith.constant 64 : index
    %10 = vector.load %arg9[%c0_11, %c64] : memref<8x96xf32, #tpu.memory_space<vmem>>, vector<8x8xf32>
    %cst_12 = arith.constant dense<0.000000e+00> : vector<8x8xf32>
    %11 = tpu.matmul %8, %9, %cst_12 {dimension_numbers = #tpu.dot_dimension_numbers<[1], [1], [0], [0], [0, 0, 1, 0], [], []>} : vector<8x8xf32>, vector<8x8xf32>, vector<8x8xf32> -> vector<8x8xf32>
    %cst_13 = arith.constant dense<0xFF800000> : vector<8xf32>
    %12 = vector.multi_reduction <maximumf>, %11, %cst_13 [1] : vector<8x8xf32> to vector<8xf32>
    %13 = vector.shape_cast %12 : vector<8xf32> to vector<8x1xf32>
    %14 = vector.broadcast %13 : vector<8x1xf32> to vector<8x8xf32>
    %15 = arith.subf %11, %14 : vector<8x8xf32>
    %16 = math.exp %15 : vector<8x8xf32>
    %cst_14 = arith.constant dense<0.000000e+00> : vector<8xf32>
    %17 = vector.multi_reduction <add>, %16, %cst_14 [1] : vector<8x8xf32> to vector<8xf32>
    %18 = vector.shape_cast %17 : vector<8xf32> to vector<8x1xf32>
    %19 = vector.broadcast %18 : vector<8x1xf32> to vector<8x8xf32>
    %20 = arith.divf %16, %19 : vector<8x8xf32>
    %cst_15 = arith.constant dense<0.000000e+00> : vector<8x8xf32>
    %21 = tpu.matmul %20, %10, %cst_15 {dimension_numbers = #tpu.dot_dimension_numbers<[1], [0], [0], [1], [0, 0, 1, 1], [], []>} : vector<8x8xf32>, vector<8x8xf32>, vector<8x8xf32> -> vector<8x8xf32>
    %c0_16 = arith.constant 0 : index
    %c8 = arith.constant 8 : index
    %22 = vector.load %arg9[%c0_16, %c8] : memref<8x96xf32, #tpu.memory_space<vmem>>, vector<8x8xf32>
    %c0_17 = arith.constant 0 : index
    %c40 = arith.constant 40 : index
    %23 = vector.load %arg9[%c0_17, %c40] : memref<8x96xf32, #tpu.memory_space<vmem>>, vector<8x8xf32>
    %c0_18 = arith.constant 0 : index
    %c72 = arith.constant 72 : index
    %24 = vector.load %arg9[%c0_18, %c72] : memref<8x96xf32, #tpu.memory_space<vmem>>, vector<8x8xf32>
    %cst_19 = arith.constant dense<0.000000e+00> : vector<8x8xf32>
    %25 = tpu.matmul %22, %23, %cst_19 {dimension_numbers = #tpu.dot_dimension_numbers<[1], [1], [0], [0], [0, 0, 1, 0], [], []>} : vector<8x8xf32>, vector<8x8xf32>, vector<8x8xf32> -> vector<8x8xf32>
    %cst_20 = arith.constant dense<0xFF800000> : vector<8xf32>
    %26 = vector.multi_reduction <maximumf>, %25, %cst_20 [1] : vector<8x8xf32> to vector<8xf32>
    %27 = vector.shape_cast %26 : vector<8xf32> to vector<8x1xf32>
    %28 = vector.broadcast %27 : vector<8x1xf32> to vector<8x8xf32>
    %29 = arith.subf %25, %28 : vector<8x8xf32>
    %30 = math.exp %29 : vector<8x8xf32>
    %cst_21 = arith.constant dense<0.000000e+00> : vector<8xf32>
    %31 = vector.multi_reduction <add>, %30, %cst_21 [1] : vector<8x8xf32> to vector<8xf32>
    %32 = vector.shape_cast %31 : vector<8xf32> to vector<8x1xf32>
    %33 = vector.broadcast %32 : vector<8x1xf32> to vector<8x8xf32>
    %34 = arith.divf %30, %33 : vector<8x8xf32>
    %cst_22 = arith.constant dense<0.000000e+00> : vector<8x8xf32>
    %35 = tpu.matmul %34, %24, %cst_22 {dimension_numbers = #tpu.dot_dimension_numbers<[1], [0], [0], [1], [0, 0, 1, 1], [], []>} : vector<8x8xf32>, vector<8x8xf32>, vector<8x8xf32> -> vector<8x8xf32>
    %c0_23 = arith.constant 0 : index
    %c16 = arith.constant 16 : index
    %36 = vector.load %arg9[%c0_23, %c16] : memref<8x96xf32, #tpu.memory_space<vmem>>, vector<8x8xf32>
    %c0_24 = arith.constant 0 : index
    %c48 = arith.constant 48 : index
    %37 = vector.load %arg9[%c0_24, %c48] : memref<8x96xf32, #tpu.memory_space<vmem>>, vector<8x8xf32>
    %c0_25 = arith.constant 0 : index
    %c80 = arith.constant 80 : index
    %38 = vector.load %arg9[%c0_25, %c80] : memref<8x96xf32, #tpu.memory_space<vmem>>, vector<8x8xf32>
    %cst_26 = arith.constant dense<0.000000e+00> : vector<8x8xf32>
    %39 = tpu.matmul %36, %37, %cst_26 {dimension_numbers = #tpu.dot_dimension_numbers<[1], [1], [0], [0], [0, 0, 1, 0], [], []>} : vector<8x8xf32>, vector<8x8xf32>, vector<8x8xf32> -> vector<8x8xf32>
    %cst_27 = arith.constant dense<0xFF800000> : vector<8xf32>
    %40 = vector.multi_reduction <maximumf>, %39, %cst_27 [1] : vector<8x8xf32> to vector<8xf32>
    %41 = vector.shape_cast %40 : vector<8xf32> to vector<8x1xf32>
    %42 = vector.broadcast %41 : vector<8x1xf32> to vector<8x8xf32>
    %43 = arith.subf %39, %42 : vector<8x8xf32>
    %44 = math.exp %43 : vector<8x8xf32>
    %cst_28 = arith.constant dense<0.000000e+00> : vector<8xf32>
    %45 = vector.multi_reduction <add>, %44, %cst_28 [1] : vector<8x8xf32> to vector<8xf32>
    %46 = vector.shape_cast %45 : vector<8xf32> to vector<8x1xf32>
    %47 = vector.broadcast %46 : vector<8x1xf32> to vector<8x8xf32>
    %48 = arith.divf %44, %47 : vector<8x8xf32>
    %cst_29 = arith.constant dense<0.000000e+00> : vector<8x8xf32>
    %49 = tpu.matmul %48, %38, %cst_29 {dimension_numbers = #tpu.dot_dimension_numbers<[1], [0], [0], [1], [0, 0, 1, 1], [], []>} : vector<8x8xf32>, vector<8x8xf32>, vector<8x8xf32> -> vector<8x8xf32>
    %c0_30 = arith.constant 0 : index
    %c24 = arith.constant 24 : index
    %50 = vector.load %arg9[%c0_30, %c24] : memref<8x96xf32, #tpu.memory_space<vmem>>, vector<8x8xf32>
    %c0_31 = arith.constant 0 : index
    %c56 = arith.constant 56 : index
    %51 = vector.load %arg9[%c0_31, %c56] : memref<8x96xf32, #tpu.memory_space<vmem>>, vector<8x8xf32>
    %c0_32 = arith.constant 0 : index
    %c88 = arith.constant 88 : index
    %52 = vector.load %arg9[%c0_32, %c88] : memref<8x96xf32, #tpu.memory_space<vmem>>, vector<8x8xf32>
    %cst_33 = arith.constant dense<0.000000e+00> : vector<8x8xf32>
    %53 = tpu.matmul %50, %51, %cst_33 {dimension_numbers = #tpu.dot_dimension_numbers<[1], [1], [0], [0], [0, 0, 1, 0], [], []>} : vector<8x8xf32>, vector<8x8xf32>, vector<8x8xf32> -> vector<8x8xf32>
    %cst_34 = arith.constant dense<0xFF800000> : vector<8xf32>
    %54 = vector.multi_reduction <maximumf>, %53, %cst_34 [1] : vector<8x8xf32> to vector<8xf32>
    %55 = vector.shape_cast %54 : vector<8xf32> to vector<8x1xf32>
    %56 = vector.broadcast %55 : vector<8x1xf32> to vector<8x8xf32>
    %57 = arith.subf %53, %56 : vector<8x8xf32>
    %58 = math.exp %57 : vector<8x8xf32>
    %cst_35 = arith.constant dense<0.000000e+00> : vector<8xf32>
    %59 = vector.multi_reduction <add>, %58, %cst_35 [1] : vector<8x8xf32> to vector<8xf32>
    %60 = vector.shape_cast %59 : vector<8xf32> to vector<8x1xf32>
    %61 = vector.broadcast %60 : vector<8x1xf32> to vector<8x8xf32>
    %62 = arith.divf %58, %61 : vector<8x8xf32>
    %cst_36 = arith.constant dense<0.000000e+00> : vector<8x8xf32>
    %63 = tpu.matmul %62, %52, %cst_36 {dimension_numbers = #tpu.dot_dimension_numbers<[1], [0], [0], [1], [0, 0, 1, 1], [], []>} : vector<8x8xf32>, vector<8x8xf32>, vector<8x8xf32> -> vector<8x8xf32>
    %64 = tpu.concatenate %21, %35, %49, %63 in 1 : vector<8x8xf32>, vector<8x8xf32>, vector<8x8xf32>, vector<8x8xf32> -> vector<8x32xf32>
    %c0_37 = arith.constant 0 : index
    %c0_38 = arith.constant 0 : index
    %65 = vector.load %arg4[%c0_37, %c0_38] : memref<32x32xf32, #tpu.memory_space<vmem>>, vector<32x32xf32>
    %cst_39 = arith.constant dense<0.000000e+00> : vector<8x32xf32>
    %66 = tpu.matmul %64, %65, %cst_39 {dimension_numbers = #tpu.dot_dimension_numbers<[1], [0], [0], [1], [0, 0, 1, 1], [], []>} : vector<8x32xf32>, vector<32x32xf32>, vector<8x32xf32> -> vector<8x32xf32>
    %67 = arith.addf %1, %66 : vector<8x32xf32>
    %c0_40 = arith.constant 0 : index
    %c0_41 = arith.constant 0 : index
    %68 = vector.load %arg5[%c0_40, %c0_41] : memref<1x32xf32, #tpu.memory_space<vmem>>, vector<1x32xf32>
    %69 = vector.broadcast %68 : vector<1x32xf32> to vector<8x32xf32>
    %70 = arith.addf %67, %69 : vector<8x32xf32>
    %c0_42 = arith.constant 0 : index
    %c0_43 = arith.constant 0 : index
    %c0_44 = arith.constant 0 : index
    %71 = vector.load %arg6[%c0_42, %c0_43, %c0_44] : memref<1x8x32xf32, #tpu.memory_space<vmem>>, vector<1x8x32xf32>
    %72 = vector.shape_cast %71 : vector<1x8x32xf32> to vector<8x32xf32>
    %73 = vector.shape_cast %70 : vector<8x32xf32> to vector<1x8x32xf32>
    tpu.vector_store %arg6[%c0_42, %c0_43, %c0_44], %73 {strides = array<i32>} : memref<1x8x32xf32, #tpu.memory_space<vmem>>, vector<1x8x32xf32>,
    %cst_45 = arith.constant dense<0.000000e+00> : vector<32xf32>
    %74 = vector.multi_reduction <add>, %70, %cst_45 [0] : vector<8x32xf32> to vector<32xf32>
    %75 = vector.shape_cast %74 : vector<32xf32> to vector<1x32xf32>
    %c0_46 = arith.constant 0 : index
    %c0_47 = arith.constant 0 : index
    %c0_48 = arith.constant 0 : index
    %76 = vector.load %arg7[%c0_46, %c0_47, %c0_48] : memref<1x1x32xf32, #tpu.memory_space<vmem>>, vector<1x1x32xf32>
    %77 = vector.shape_cast %76 : vector<1x1x32xf32> to vector<1x32xf32>
    %78 = vector.shape_cast %75 : vector<1x32xf32> to vector<1x1x32xf32>
    tpu.vector_store %arg7[%c0_46, %c0_47, %c0_48], %78 {strides = array<i32>} : memref<1x1x32xf32, #tpu.memory_space<vmem>>, vector<1x1x32xf32>,
    %79 = arith.mulf %70, %70 : vector<8x32xf32>
    %cst_49 = arith.constant dense<0.000000e+00> : vector<32xf32>
    %80 = vector.multi_reduction <add>, %79, %cst_49 [0] : vector<8x32xf32> to vector<32xf32>
    %81 = vector.shape_cast %80 : vector<32xf32> to vector<1x32xf32>
    %c0_50 = arith.constant 0 : index
    %c0_51 = arith.constant 0 : index
    %c0_52 = arith.constant 0 : index
    %82 = vector.load %arg8[%c0_50, %c0_51, %c0_52] : memref<1x1x32xf32, #tpu.memory_space<vmem>>, vector<1x1x32xf32>
    %83 = vector.shape_cast %82 : vector<1x1x32xf32> to vector<1x32xf32>
    %84 = vector.shape_cast %81 : vector<1x32xf32> to vector<1x1x32xf32>
    tpu.vector_store %arg8[%c0_50, %c0_51, %c0_52], %84 {strides = array<i32>} : memref<1x1x32xf32, #tpu.memory_space<vmem>>, vector<1x1x32xf32>,
    return
  }
  func.func @transform_0(%arg0: i32) -> (i32, i32, i32) {
    %c0_i32 = arith.constant 0 : i32
    %c0_i32_0 = arith.constant 0 : i32
    %c0_i32_1 = arith.constant 0 : i32
    return %arg0, %c0_i32, %c0_i32_0 : i32, i32, i32
  }
  func.func @transform_1(%arg0: i32) -> (i32, i32) {
    %c0_i32 = arith.constant 0 : i32
    %c0_i32_0 = arith.constant 0 : i32
    %c0_i32_1 = arith.constant 0 : i32
    return %c0_i32, %c0_i32_0 : i32, i32
  }
  func.func @transform_2(%arg0: i32) -> (i32, i32) {
    %c0_i32 = arith.constant 0 : i32
    %c0_i32_0 = arith.constant 0 : i32
    %c0_i32_1 = arith.constant 0 : i32
    return %c0_i32, %c0_i32_0 : i32, i32
  }
  func.func @transform_3(%arg0: i32) -> (i32, i32) {
    %c0_i32 = arith.constant 0 : i32
    %c0_i32_0 = arith.constant 0 : i32
    %c0_i32_1 = arith.constant 0 : i32
    return %c0_i32, %c0_i32_0 : i32, i32
  }
  func.func @transform_4(%arg0: i32) -> (i32, i32) {
    %c0_i32 = arith.constant 0 : i32
    %c0_i32_0 = arith.constant 0 : i32
    %c0_i32_1 = arith.constant 0 : i32
    return %c0_i32, %c0_i32_0 : i32, i32
  }
  func.func @transform_5(%arg0: i32) -> (i32, i32, i32) {
    %c0_i32 = arith.constant 0 : i32
    %c0_i32_0 = arith.constant 0 : i32
    %c0_i32_1 = arith.constant 0 : i32
    return %arg0, %c0_i32, %c0_i32_0 : i32, i32, i32
  }
  func.func @transform_6(%arg0: i32) -> (i32, i32, i32) {
    %c0_i32 = arith.constant 0 : i32
    %c0_i32_0 = arith.constant 0 : i32
    %c0_i32_1 = arith.constant 0 : i32
    return %arg0, %c0_i32, %c0_i32_0 : i32, i32, i32
  }
  func.func @transform_7(%arg0: i32) -> (i32, i32, i32) {
    %c0_i32 = arith.constant 0 : i32
    %c0_i32_0 = arith.constant 0 : i32
    %c0_i32_1 = arith.constant 0 : i32
    return %arg0, %c0_i32, %c0_i32_0 : i32, i32, i32
  }
}

module attributes {stable_mosaic.version = 11 : i64} {
  func.func @_ffn_kernel(%arg0: i32, %arg1: memref<16x32xf32, #tpu.memory_space<vmem>>, %arg2: memref<1x32xf32, #tpu.memory_space<vmem>>, %arg3: memref<1x32xf32, #tpu.memory_space<vmem>>, %arg4: memref<32x64xf32, #tpu.memory_space<vmem>>, %arg5: memref<1x64xf32, #tpu.memory_space<vmem>>, %arg6: memref<64x32xf32, #tpu.memory_space<vmem>>, %arg7: memref<1x32xf32, #tpu.memory_space<vmem>>, %arg8: memref<16x32xf32, #tpu.memory_space<vmem>>, %arg9: memref<1x1x32xf32, #tpu.memory_space<vmem>>, %arg10: memref<1x1x32xf32, #tpu.memory_space<vmem>>) attributes {dimension_semantics = [#tpu.dimension_semantics<parallel>], iteration_bounds = array<i64: 1>, scalar_prefetch = 0 : i64, scratch_operands = 0 : i64, tpu.core_type = #tpu.core_type<tc>, window_params = [{transform_indices = @transform_0, window_bounds = array<i64: 16, 32>}, {pipeline_mode = #tpu.pipeline_mode<synchronous>, transform_indices = @transform_1, window_bounds = array<i64: 1, 32>}, {pipeline_mode = #tpu.pipeline_mode<synchronous>, transform_indices = @transform_2, window_bounds = array<i64: 1, 32>}, {pipeline_mode = #tpu.pipeline_mode<synchronous>, transform_indices = @transform_3, window_bounds = array<i64: 32, 64>}, {pipeline_mode = #tpu.pipeline_mode<synchronous>, transform_indices = @transform_4, window_bounds = array<i64: 1, 64>}, {pipeline_mode = #tpu.pipeline_mode<synchronous>, transform_indices = @transform_5, window_bounds = array<i64: 64, 32>}, {pipeline_mode = #tpu.pipeline_mode<synchronous>, transform_indices = @transform_6, window_bounds = array<i64: 1, 32>}, {transform_indices = @transform_7, window_bounds = array<i64: 16, 32>}, {transform_indices = @transform_8, window_bounds = array<i64: 1, 1, 32>}, {transform_indices = @transform_9, window_bounds = array<i64: 1, 1, 32>}]} {
    %c0 = arith.constant 0 : index
    %c0_0 = arith.constant 0 : index
    %0 = vector.load %arg1[%c0, %c0_0] : memref<16x32xf32, #tpu.memory_space<vmem>>, vector<16x32xf32>
    %c0_1 = arith.constant 0 : index
    %c0_2 = arith.constant 0 : index
    %1 = vector.load %arg2[%c0_1, %c0_2] : memref<1x32xf32, #tpu.memory_space<vmem>>, vector<1x32xf32>
    %2 = vector.broadcast %1 : vector<1x32xf32> to vector<16x32xf32>
    %3 = arith.mulf %0, %2 : vector<16x32xf32>
    %c0_3 = arith.constant 0 : index
    %c0_4 = arith.constant 0 : index
    %4 = vector.load %arg3[%c0_3, %c0_4] : memref<1x32xf32, #tpu.memory_space<vmem>>, vector<1x32xf32>
    %5 = vector.broadcast %4 : vector<1x32xf32> to vector<16x32xf32>
    %6 = arith.addf %3, %5 : vector<16x32xf32>
    %c0_5 = arith.constant 0 : index
    %c0_6 = arith.constant 0 : index
    %7 = vector.load %arg4[%c0_5, %c0_6] : memref<32x64xf32, #tpu.memory_space<vmem>>, vector<32x64xf32>
    %cst = arith.constant dense<0.000000e+00> : vector<16x64xf32>
    %8 = tpu.matmul %6, %7, %cst {dimension_numbers = #tpu.dot_dimension_numbers<[1], [0], [0], [1], [0, 0, 1, 1], [], []>} : vector<16x32xf32>, vector<32x64xf32>, vector<16x64xf32> -> vector<16x64xf32>
    %c0_7 = arith.constant 0 : index
    %c0_8 = arith.constant 0 : index
    %9 = vector.load %arg5[%c0_7, %c0_8] : memref<1x64xf32, #tpu.memory_space<vmem>>, vector<1x64xf32>
    %10 = vector.broadcast %9 : vector<1x64xf32> to vector<16x64xf32>
    %11 = arith.addf %8, %10 : vector<16x64xf32>
    %cst_9 = arith.constant 5.000000e-01 : f32
    %12 = vector.broadcast %cst_9 : f32 to vector<16x64xf32>
    %13 = arith.mulf %12, %11 : vector<16x64xf32>
    %cst_10 = arith.constant 0.707106769 : f32
    %14 = vector.broadcast %cst_10 : f32 to vector<16x64xf32>
    %15 = arith.mulf %11, %14 : vector<16x64xf32>
    %16 = math.erf %15 : vector<16x64xf32>
    %cst_11 = arith.constant 1.000000e+00 : f32
    %17 = vector.broadcast %cst_11 : f32 to vector<16x64xf32>
    %18 = arith.addf %17, %16 : vector<16x64xf32>
    %19 = arith.mulf %13, %18 : vector<16x64xf32>
    %c0_12 = arith.constant 0 : index
    %c0_13 = arith.constant 0 : index
    %20 = vector.load %arg6[%c0_12, %c0_13] : memref<64x32xf32, #tpu.memory_space<vmem>>, vector<64x32xf32>
    %cst_14 = arith.constant dense<0.000000e+00> : vector<16x32xf32>
    %21 = tpu.matmul %19, %20, %cst_14 {dimension_numbers = #tpu.dot_dimension_numbers<[1], [0], [0], [1], [0, 0, 1, 1], [], []>} : vector<16x64xf32>, vector<64x32xf32>, vector<16x32xf32> -> vector<16x32xf32>
    %c0_15 = arith.constant 0 : index
    %c0_16 = arith.constant 0 : index
    %22 = vector.load %arg7[%c0_15, %c0_16] : memref<1x32xf32, #tpu.memory_space<vmem>>, vector<1x32xf32>
    %23 = vector.broadcast %22 : vector<1x32xf32> to vector<16x32xf32>
    %24 = arith.addf %21, %23 : vector<16x32xf32>
    %25 = arith.addf %6, %24 : vector<16x32xf32>
    %c0_17 = arith.constant 0 : index
    %c0_18 = arith.constant 0 : index
    %26 = vector.load %arg8[%c0_17, %c0_18] : memref<16x32xf32, #tpu.memory_space<vmem>>, vector<16x32xf32>
    tpu.vector_store %arg8[%c0_17, %c0_18], %25 {strides = array<i32>} : memref<16x32xf32, #tpu.memory_space<vmem>>, vector<16x32xf32>,
    %cst_19 = arith.constant dense<0.000000e+00> : vector<32xf32>
    %27 = vector.multi_reduction <add>, %25, %cst_19 [0] : vector<16x32xf32> to vector<32xf32>
    %28 = vector.shape_cast %27 : vector<32xf32> to vector<1x32xf32>
    %c0_20 = arith.constant 0 : index
    %c0_21 = arith.constant 0 : index
    %c0_22 = arith.constant 0 : index
    %29 = vector.load %arg9[%c0_20, %c0_21, %c0_22] : memref<1x1x32xf32, #tpu.memory_space<vmem>>, vector<1x1x32xf32>
    %30 = vector.shape_cast %29 : vector<1x1x32xf32> to vector<1x32xf32>
    %31 = vector.shape_cast %28 : vector<1x32xf32> to vector<1x1x32xf32>
    tpu.vector_store %arg9[%c0_20, %c0_21, %c0_22], %31 {strides = array<i32>} : memref<1x1x32xf32, #tpu.memory_space<vmem>>, vector<1x1x32xf32>,
    %32 = arith.mulf %25, %25 : vector<16x32xf32>
    %cst_23 = arith.constant dense<0.000000e+00> : vector<32xf32>
    %33 = vector.multi_reduction <add>, %32, %cst_23 [0] : vector<16x32xf32> to vector<32xf32>
    %34 = vector.shape_cast %33 : vector<32xf32> to vector<1x32xf32>
    %c0_24 = arith.constant 0 : index
    %c0_25 = arith.constant 0 : index
    %c0_26 = arith.constant 0 : index
    %35 = vector.load %arg10[%c0_24, %c0_25, %c0_26] : memref<1x1x32xf32, #tpu.memory_space<vmem>>, vector<1x1x32xf32>
    %36 = vector.shape_cast %35 : vector<1x1x32xf32> to vector<1x32xf32>
    %37 = vector.shape_cast %34 : vector<1x32xf32> to vector<1x1x32xf32>
    tpu.vector_store %arg10[%c0_24, %c0_25, %c0_26], %37 {strides = array<i32>} : memref<1x1x32xf32, #tpu.memory_space<vmem>>, vector<1x1x32xf32>,
    return
  }
  func.func @transform_0(%arg0: i32) -> (i32, i32) {
    %c0_i32 = arith.constant 0 : i32
    %c0_i32_0 = arith.constant 0 : i32
    return %arg0, %c0_i32 : i32, i32
  }
  func.func @transform_1(%arg0: i32) -> (i32, i32) {
    %c0_i32 = arith.constant 0 : i32
    %c0_i32_0 = arith.constant 0 : i32
    %c0_i32_1 = arith.constant 0 : i32
    return %c0_i32, %c0_i32_0 : i32, i32
  }
  func.func @transform_2(%arg0: i32) -> (i32, i32) {
    %c0_i32 = arith.constant 0 : i32
    %c0_i32_0 = arith.constant 0 : i32
    %c0_i32_1 = arith.constant 0 : i32
    return %c0_i32, %c0_i32_0 : i32, i32
  }
  func.func @transform_3(%arg0: i32) -> (i32, i32) {
    %c0_i32 = arith.constant 0 : i32
    %c0_i32_0 = arith.constant 0 : i32
    %c0_i32_1 = arith.constant 0 : i32
    return %c0_i32, %c0_i32_0 : i32, i32
  }
  func.func @transform_4(%arg0: i32) -> (i32, i32) {
    %c0_i32 = arith.constant 0 : i32
    %c0_i32_0 = arith.constant 0 : i32
    %c0_i32_1 = arith.constant 0 : i32
    return %c0_i32, %c0_i32_0 : i32, i32
  }
  func.func @transform_5(%arg0: i32) -> (i32, i32) {
    %c0_i32 = arith.constant 0 : i32
    %c0_i32_0 = arith.constant 0 : i32
    %c0_i32_1 = arith.constant 0 : i32
    return %c0_i32, %c0_i32_0 : i32, i32
  }
  func.func @transform_6(%arg0: i32) -> (i32, i32) {
    %c0_i32 = arith.constant 0 : i32
    %c0_i32_0 = arith.constant 0 : i32
    %c0_i32_1 = arith.constant 0 : i32
    return %c0_i32, %c0_i32_0 : i32, i32
  }
  func.func @transform_7(%arg0: i32) -> (i32, i32) {
    %c0_i32 = arith.constant 0 : i32
    %c0_i32_0 = arith.constant 0 : i32
    return %arg0, %c0_i32 : i32, i32
  }
  func.func @transform_8(%arg0: i32) -> (i32, i32, i32) {
    %c0_i32 = arith.constant 0 : i32
    %c0_i32_0 = arith.constant 0 : i32
    %c0_i32_1 = arith.constant 0 : i32
    return %arg0, %c0_i32, %c0_i32_0 : i32, i32, i32
  }
  func.func @transform_9(%arg0: i32) -> (i32, i32, i32) {
    %c0_i32 = arith.constant 0 : i32
    %c0_i32_0 = arith.constant 0 : i32
    %c0_i32_1 = arith.constant 0 : i32
    return %arg0, %c0_i32, %c0_i32_0 : i32, i32, i32
  }
}

module attributes {stable_mosaic.version = 11 : i64} {
  func.func @_norm_kernel(%arg0: i32, %arg1: memref<4x128xf32, #tpu.memory_space<vmem>>, %arg2: memref<1x128xf32, #tpu.memory_space<vmem>>, %arg3: memref<1x128xf32, #tpu.memory_space<vmem>>, %arg4: memref<4x128xf32, #tpu.memory_space<vmem>>) attributes {dimension_semantics = [#tpu.dimension_semantics<parallel>], iteration_bounds = array<i64: 1>, scalar_prefetch = 0 : i64, scratch_operands = 0 : i64, tpu.core_type = #tpu.core_type<tc>, window_params = [{transform_indices = @transform_0, window_bounds = array<i64: 4, 128>}, {pipeline_mode = #tpu.pipeline_mode<synchronous>, transform_indices = @transform_1, window_bounds = array<i64: 1, 128>}, {pipeline_mode = #tpu.pipeline_mode<synchronous>, transform_indices = @transform_2, window_bounds = array<i64: 1, 128>}, {transform_indices = @transform_3, window_bounds = array<i64: 4, 128>}]} {
    %c0 = arith.constant 0 : index
    %c0_0 = arith.constant 0 : index
    %0 = vector.load %arg1[%c0, %c0_0] : memref<4x128xf32, #tpu.memory_space<vmem>>, vector<4x128xf32>
    %c0_1 = arith.constant 0 : index
    %c0_2 = arith.constant 0 : index
    %1 = vector.load %arg2[%c0_1, %c0_2] : memref<1x128xf32, #tpu.memory_space<vmem>>, vector<1x128xf32>
    %2 = vector.broadcast %1 : vector<1x128xf32> to vector<4x128xf32>
    %3 = arith.mulf %0, %2 : vector<4x128xf32>
    %c0_3 = arith.constant 0 : index
    %c0_4 = arith.constant 0 : index
    %4 = vector.load %arg3[%c0_3, %c0_4] : memref<1x128xf32, #tpu.memory_space<vmem>>, vector<1x128xf32>
    %5 = vector.broadcast %4 : vector<1x128xf32> to vector<4x128xf32>
    %6 = arith.addf %3, %5 : vector<4x128xf32>
    %c0_5 = arith.constant 0 : index
    %c0_6 = arith.constant 0 : index
    %7 = vector.load %arg4[%c0_5, %c0_6] : memref<4x128xf32, #tpu.memory_space<vmem>>, vector<4x128xf32>
    tpu.vector_store %arg4[%c0_5, %c0_6], %6 {strides = array<i32>} : memref<4x128xf32, #tpu.memory_space<vmem>>, vector<4x128xf32>,
    return
  }
  func.func @transform_0(%arg0: i32) -> (i32, i32) {
    %c0_i32 = arith.constant 0 : i32
    %c0_i32_0 = arith.constant 0 : i32
    return %arg0, %c0_i32 : i32, i32
  }
  func.func @transform_1(%arg0: i32) -> (i32, i32) {
    %c0_i32 = arith.constant 0 : i32
    %c0_i32_0 = arith.constant 0 : i32
    %c0_i32_1 = arith.constant 0 : i32
    return %c0_i32, %c0_i32_0 : i32, i32
  }
  func.func @transform_2(%arg0: i32) -> (i32, i32) {
    %c0_i32 = arith.constant 0 : i32
    %c0_i32_0 = arith.constant 0 : i32
    %c0_i32_1 = arith.constant 0 : i32
    return %c0_i32, %c0_i32_0 : i32, i32
  }
  func.func @transform_3(%arg0: i32) -> (i32, i32) {
    %c0_i32 = arith.constant 0 : i32
    %c0_i32_0 = arith.constant 0 : i32
    return %arg0, %c0_i32 : i32, i32
  }
}

</mosaic_0001>

<llo_original>
// kernel: tst_encoder_layer.5
$region0: #{tst_encoder_layer.5}
  #allocation0 [shape = 'u32[]', space=smem, size = 0x4, offset = 0x4, fixed_abs, tag = 'smem constant byte address 0x4 - core index']
  #allocation1 [shape = 'u32[72,128]{1,0:T(1,128)}', space=vmem, size = 0x9000, scoped, tag = 'internal scratch']
  %s0 = inlined_call_operand.vmem [shape: f32[4,128], index: 0, kind: input, shape index: {}]
  %s1 = inlined_call_operand.vmem [shape: f32[1,128], index: 1, kind: input, shape index: {}]
  %s2 = inlined_call_operand.vmem [shape: f32[1,128], index: 2, kind: input, shape index: {}]
  %s3 = inlined_call_operand.vmem [shape: f32[4,128], index: 3, kind: output, shape index: {}]
  %s4 = sld [smem:[#allocation0]]
  $region22: #{tst_encoder_layer.5} parent=0
    _
  %s6 = ssub.s32 1, %s4
  %s7 = scalar_select 0, %s6, %s4
  // Predicated region
  $region2: #{tst_encoder_layer.5} parent=0 // pred_check
    _
  $region3: #{tst_encoder_layer.5} parent=0 // pred_check_branch
    %9 = sbr.rel (0) target = $region5
  $region4: #{tst_encoder_layer.5} parent=0 // pred_region
    _
  $region5: #{tst_encoder_layer.5} parent=0 // pred_fallthru
    _
  // Predicated region
  $region6: #{tst_encoder_layer.5} parent=0 // pred_check
    _
  $region7: #{tst_encoder_layer.5} parent=0 // pred_check_branch
    %11 = sbr.rel (0) target = $region9
  $region8: #{tst_encoder_layer.5} parent=0 // pred_region
    _
  $region9: #{tst_encoder_layer.5} parent=0 // pred_fallthru
    _
  // Predicated region
  $region10: #{tst_encoder_layer.5} parent=0 // pred_check
    _
  $region11: #{tst_encoder_layer.5} parent=0 // pred_check_branch
    %13 = sbr.rel (0) target = $region13
  $region12: #{tst_encoder_layer.5} parent=0 // pred_region
    _
  $region13: #{tst_encoder_layer.5} parent=0 // pred_fallthru
    _
  %v14 = vld [vmem:[%s0] sm:$0xf]
  %v15 = vld [vmem:[%s1] sm:$0x1]
  %v17 = vperm.slane %v15, 0
  %v19 = vmul.f32 %v14, %v17
  %v20 = vld [vmem:[%s2] sm:$0x1]
  %v22 = vperm.slane %v20, 0
  %v24 = vadd.f32 %v19, %v22
  %25 = vst [vmem:[%s3] sm:$0xf] %v24
  // Predicated region
  $region14: #{tst_encoder_layer.5} parent=0 // pred_check
    _
  $region15: #{tst_encoder_layer.5} parent=0 // pred_check_branch
    %27 = sbr.rel (0) target = $region17
  $region16: #{tst_encoder_layer.5} parent=0 // pred_region
    _
  $region17: #{tst_encoder_layer.5} parent=0 // pred_fallthru
    _
  // Predicated region
  $region18: #{tst_encoder_layer.5} parent=0 // pred_check
    _
  $region19: #{tst_encoder_layer.5} parent=0 // pred_check_branch
    %29 = sbr.rel (0) target = $region21
  $region20: #{tst_encoder_layer.5} parent=0 // pred_region
    _
  $region21: #{tst_encoder_layer.5} parent=0 // pred_fallthru
    _

// kernel: tst_encoder_layer.4
$region0: #{tst_encoder_layer.4}
  #allocation0 [shape = 'u32[]', space=smem, size = 0x4, offset = 0x4, fixed_abs, tag = 'smem constant byte address 0x4 - core index']
  #allocation1 [shape = 'u32[72,128]{1,0:T(1,128)}', space=vmem, size = 0x9000, scoped, tag = 'internal scratch']
  %s0 = inlined_call_operand.vmem [shape: f32[16,32], index: 0, kind: input, shape index: {}]
  %s1 = inlined_call_operand.vmem [shape: f32[1,32], index: 1, kind: input, shape index: {}]
  %s2 = inlined_call_operand.vmem [shape: f32[1,32], index: 2, kind: input, shape index: {}]
  %s3 = inlined_call_operand.vmem [shape: f32[32,64], index: 3, kind: input, shape index: {}]
  %s4 = inlined_call_operand.vmem [shape: f32[1,64], index: 4, kind: input, shape index: {}]
  %s5 = inlined_call_operand.vmem [shape: f32[64,32], index: 5, kind: input, shape index: {}]
  %s6 = inlined_call_operand.vmem [shape: f32[1,32], index: 6, kind: input, shape index: {}]
  %s7 = inlined_call_operand.vmem [shape: f32[16,32], index: 7, kind: output, shape index: {0}]
  %s8 = inlined_call_operand.vmem [shape: f32[1,1,32], index: 8, kind: output, shape index: {1}]
  %s9 = inlined_call_operand.vmem [shape: f32[1,1,32], index: 9, kind: output, shape index: {2}]
  %10 = xla_tuple %s7, %s8, %s9
  %s11 = sld [smem:[#allocation0]]
  $region54: #{tst_encoder_layer.4} parent=0
    _
  %s13 = ssub.s32 1, %s11
  %s14 = scalar_select 0, %s13, %s11
  // Predicated region
  $region2: #{tst_encoder_layer.4} parent=0 // pred_check
    _
  $region3: #{tst_encoder_layer.4} parent=0 // pred_check_branch
    %16 = sbr.rel (0) target = $region5
  $region4: #{tst_encoder_layer.4} parent=0 // pred_region
    _
  $region5: #{tst_encoder_layer.4} parent=0 // pred_fallthru
    _
  // Predicated region
  $region6: #{tst_encoder_layer.4} parent=0 // pred_check
    _
  $region7: #{tst_encoder_layer.4} parent=0 // pred_check_branch
    %18 = sbr.rel (0) target = $region9
  $region8: #{tst_encoder_layer.4} parent=0 // pred_region
    _
  $region9: #{tst_encoder_layer.4} parent=0 // pred_fallthru
    _
  // Predicated region
  $region10: #{tst_encoder_layer.4} parent=0 // pred_check
    _
  $region11: #{tst_encoder_layer.4} parent=0 // pred_check_branch
    %20 = sbr.rel (0) target = $region13
  $region12: #{tst_encoder_layer.4} parent=0 // pred_region
    _
  $region13: #{tst_encoder_layer.4} parent=0 // pred_fallthru
    _
  // Predicated region
  $region14: #{tst_encoder_layer.4} parent=0 // pred_check
    _
  $region15: #{tst_encoder_layer.4} parent=0 // pred_check_branch
    %22 = sbr.rel (0) target = $region17
  $region16: #{tst_encoder_layer.4} parent=0 // pred_region
    _
  $region17: #{tst_encoder_layer.4} parent=0 // pred_fallthru
    _
  // Predicated region
  $region18: #{tst_encoder_layer.4} parent=0 // pred_check
    _
  $region19: #{tst_encoder_layer.4} parent=0 // pred_check_branch
    %24 = sbr.rel (0) target = $region21
  $region20: #{tst_encoder_layer.4} parent=0 // pred_region
    _
  $region21: #{tst_encoder_layer.4} parent=0 // pred_fallthru
    _
  // Predicated region
  $region22: #{tst_encoder_layer.4} parent=0 // pred_check
    _
  $region23: #{tst_encoder_layer.4} parent=0 // pred_check_branch
    %26 = sbr.rel (0) target = $region25
  $region24: #{tst_encoder_layer.4} parent=0 // pred_region
    _
  $region25: #{tst_encoder_layer.4} parent=0 // pred_fallthru
    _
  // Predicated region
  $region26: #{tst_encoder_layer.4} parent=0 // pred_check
    _
  $region27: #{tst_encoder_layer.4} parent=0 // pred_check_branch
    %28 = sbr.rel (0) target = $region29
  $region28: #{tst_encoder_layer.4} parent=0 // pred_region
    _
  $region29: #{tst_encoder_layer.4} parent=0 // pred_fallthru
    _
  %v29 = vld [vmem:[%s0] sm:$0xff]
  %v30 = vld [vmem:[%s0 + $0x8] sm:$0xff]
  %v31 = vld [vmem:[%s1] sm:$0x1]
  %v33 = vperm.slane %v31, 0
  %v35 = vmul.f32 %v29, %v33
  %v36 = vmul.f32 %v30, %v33
  %v37 = vld [vmem:[%s2] sm:$0x1]
  %v39 = vperm.slane %v37, 0
  %v41 = vadd.f32 %v35, %v39
  %v42 = vadd.f32 %v36, %v39
  %v43 = vld [vmem:[%s3] sm:$0xff]
  %v44 = vld [vmem:[%s3 + $0x8] sm:$0xff]
  %v45 = vld [vmem:[%s3 + $0x10] sm:$0xff]
  %v46 = vld [vmem:[%s3 + $0x18] sm:$0xff]
  %v47 = vld [vmem:[%s4] sm:$0x1]
  %v49 = vperm.slane %v47, 0
  %vm51 = vcmask 261120
  %v53 = vsel %vm51, %v41, 0
  %v56 = vsel %vm51, %v42, 0
  %58 = vmatpush.msra.mxu0 0.0
  %59 = vmatpush.msra.mxu0 0.0
  %60 = vmatpush.msra.mxu0 0.0
  %61 = vmatpush.msra.mxu0 0.0
  %62 = vmatpush.msra.mxu0 0.0
  %63 = vmatpush.msra.mxu0 0.0
  %64 = vmatpush.msra.mxu0 0.0
  %65 = vmatpush.msra.mxu0 0.0
  %66 = vmatpush.msra.mxu0 0.0
  %67 = vmatpush.msra.mxu0 0.0
  %68 = vmatpush.msra.mxu0 0.0
  %69 = vmatpush.msra.mxu0 0.0
  %70 = vmatpush.msra.mxu0 %v46
  %71 = vmatpush.msra.mxu0 %v45
  %72 = vmatpush.msra.mxu0 %v44
  %73 = vmatpush.msra.mxu0 %v43
  %74 = vmatmul.f32.gmra.mxu0 %v53
  %v75 = vpop.f32.mrf.mxu0
  %v76 = vadd.f32 %v49, %v75
  %77 = vmatmul.f32.gmra.mxu0 %v56
  %v78 = vpop.f32.mrf.mxu0
  %v79 = vadd.f32 %v49, %v78
  %80 = vdwg.mxu0
  %v81 = vmul.f32 %v76, 0.5
  %v82 = vmul.f32 %v79, 0.5
  %v83 = vmul.f32 %v76, 0.70710677
  %v84 = vmul.f32 %v79, 0.70710677
  %v85 = vmul.f32 %v83, %v83
  %v86 = vmin.f32 16.0, %v85
  %v87 = vmul.f32 %v86, 2.1237322e-06
  %v88 = vadd.f32 %v87, 0.00028619796
  %v89 = vmul.f32 %v86, %v88
  %v90 = vadd.f32 %v89, 0.0036580483
  %v91 = vmul.f32 %v86, %v90
  %v92 = vadd.f32 %v91, 0.05243302
  %v93 = vmul.f32 %v86, %v92
  %v94 = vadd.f32 %v93, 0.18741608
  %v95 = vmul.f32 %v86, %v94
  %v96 = vadd.f32 %v95, 1.1283791
  %v97 = vmul.f32 %v83, %v96
  %v98 = vmul.f32 %v86, 3.8918573e-05
  %v99 = vadd.f32 %v98, 0.001143296
  %v100 = vmul.f32 %v86, %v99
  %v101 = vadd.f32 %v100, 0.014752088
  %v102 = vmul.f32 %v86, %v101
  %v103 = vadd.f32 %v102, 0.112945676
  %v104 = vmul.f32 %v86, %v103
  %v105 = vadd.f32 %v104, 0.4994258
  %v106 = vmul.f32 %v86, %v105
  %v107 = vadd.f32 %v106, 1.0
  %v108 = vrcp.pop %v107
  %v109 = vmul.f32 %v107, %v108
  %v110 = vsub.f32 1.0, %v109
  %v111 = vmul.f32 %v108, %v110
  %v112 = vadd.f32 %v108, %v111
  %vm113 = vweird.f32 %v107
  %vm114 = vweird.f32 %v108
  %vm115 = vmor %vm113, %vm114
  %v116 = vsel %vm115, %v108, %v112
  %v117 = vand.u32 2147483647, %v107
  %vm118 = vcmp.eq.f32.partialorder %v117, 8.507059e+37
  %v119 = vand.u32 %v107, 2147483648
  %v120 = vor.u32 1.1754944e-38, %v119
  %v121 = vsel %vm118, %v120, %v116
  %v122 = vmul.f32 %v97, %v121
  %v123 = vmin.f32 %v122, 1.0
  %v124 = vmax.f32 %v123, -1.0
  %v125 = vmul.f32 %v84, %v84
  %v126 = vmin.f32 16.0, %v125
  %v127 = vmul.f32 %v126, 2.1237322e-06
  %v128 = vadd.f32 %v127, 0.00028619796
  %v129 = vmul.f32 %v126, %v128
  %v130 = vadd.f32 %v129, 0.0036580483
  %v131 = vmul.f32 %v126, %v130
  %v132 = vadd.f32 %v131, 0.05243302
  %v133 = vmul.f32 %v126, %v132
  %v134 = vadd.f32 %v133, 0.18741608
  %v135 = vmul.f32 %v126, %v134
  %v136 = vadd.f32 %v135, 1.1283791
  %v137 = vmul.f32 %v84, %v136
  %v138 = vmul.f32 %v126, 3.8918573e-05
  %v139 = vadd.f32 %v138, 0.001143296
  %v140 = vmul.f32 %v126, %v139
  %v141 = vadd.f32 %v140, 0.014752088
  %v142 = vmul.f32 %v126, %v141
  %v143 = vadd.f32 %v142, 0.112945676
  %v144 = vmul.f32 %v126, %v143
  %v145 = vadd.f32 %v144, 0.4994258
  %v146 = vmul.f32 %v126, %v145
  %v147 = vadd.f32 %v146, 1.0
  %v148 = vrcp.pop %v147
  %v149 = vmul.f32 %v147, %v148
  %v150 = vsub.f32 1.0, %v149
  %v151 = vmul.f32 %v148, %v150
  %v152 = vadd.f32 %v148, %v151
  %vm153 = vweird.f32 %v147
  %vm154 = vweird.f32 %v148
  %vm155 = vmor %vm153, %vm154
  %v156 = vsel %vm155, %v148, %v152
  %v157 = vand.u32 2147483647, %v147
  %vm158 = vcmp.eq.f32.partialorder %v157, 8.507059e+37
  %v159 = vand.u32 %v147, 2147483648
  %v160 = vor.u32 1.1754944e-38, %v159
  %v161 = vsel %vm158, %v160, %v156
  %v162 = vmul.f32 %v137, %v161
  %v163 = vmin.f32 %v162, 1.0
  %v164 = vmax.f32 %v163, -1.0
  %v165 = vadd.f32 %v124, 1.0
  %v166 = vadd.f32 %v164, 1.0
  %v167 = vmul.f32 %v81, %v165
  %v168 = vmul.f32 %v82, %v166
  %v169 = vld [vmem:[%s5] sm:$0xff]
  %v170 = vld [vmem:[%s5 + $0x8] sm:$0xff]
  %v171 = vld [vmem:[%s5 + $0x10] sm:$0xff]
  %v172 = vld [vmem:[%s5 + $0x18] sm:$0xff]
  %v173 = vld [vmem:[%s5 + $0x20] sm:$0xff]
  %v174 = vld [vmem:[%s5 + $0x28] sm:$0xff]
  %v175 = vld [vmem:[%s5 + $0x30] sm:$0xff]
  %v176 = vld [vmem:[%s5 + $0x38] sm:$0xff]
  %v177 = vld [vmem:[%s6] sm:$0x1]
  %v179 = vperm.slane %v177, 0
  %vm181 = vcmask 523264
  %v183 = vsel %vm181, %v167, 0
  %v186 = vsel %vm181, %v168, 0
  %188 = vmatpush.msra.mxu0 0.0
  %189 = vmatpush.msra.mxu0 0.0
  %190 = vmatpush.msra.mxu0 0.0
  %191 = vmatpush.msra.mxu0 0.0
  %192 = vmatpush.msra.mxu0 0.0
  %193 = vmatpush.msra.mxu0 0.0
  %194 = vmatpush.msra.mxu0 0.0
  %195 = vmatpush.msra.mxu0 0.0
  %196 = vmatpush.msra.mxu0 %v176
  %197 = vmatpush.msra.mxu0 %v175
  %198 = vmatpush.msra.mxu0 %v174
  %199 = vmatpush.msra.mxu0 %v173
  %200 = vmatpush.msra.mxu0 %v172
  %201 = vmatpush.msra.mxu0 %v171
  %202 = vmatpush.msra.mxu0 %v170
  %203 = vmatpush.msra.mxu0 %v169
  %204 = vmatmul.f32.gmra.mxu0 %v183
  %v205 = vpop.f32.mrf.mxu0
  %v206 = vadd.f32 %v179, %v205
  %207 = vmatmul.f32.gmra.mxu0 %v186
  %v208 = vpop.f32.mrf.mxu0
  %v209 = vadd.f32 %v179, %v208
  %210 = vdwg.mxu0
  %v211 = vadd.f32 %v41, %v206
  %v212 = vadd.f32 %v42, %v209
  %213 = vst.msk [vmem:[%s7] sm:$0xff] %vm51, %v211
  %214 = vst.msk [vmem:[%s7 + $0x8] sm:$0xff] %vm51, %v212
  %v215 = vsel %vm51, %v211, 0.0
  %v216 = vsel %vm51, %v212, 0.0
  %v217 = vadd.f32 %v215, %v216
  %v218 = vrot.slane %v217, 4
  %v219 = vadd.f32 %v217, %v218
  %v220 = vrot.slane %v219, 2
  %v221 = vadd.f32 %v219, %v220
  %v222 = vrot.slane %v221, 1
  %v223 = vadd.f32 %v221, %v222
  %vm224 = vcmask 253952
  %225 = vst.msk [vmem:[%s8] sm:$0x1] %vm224, %v223
  %v226 = vmul.f32 %v211, %v211
  %v227 = vmul.f32 %v212, %v212
  %v228 = vsel %vm51, %v226, 0.0
  %v229 = vsel %vm51, %v227, 0.0
  %v230 = vadd.f32 %v228, %v229
  %v231 = vrot.slane %v230, 4
  %v232 = vadd.f32 %v230, %v231
  %v233 = vrot.slane %v232, 2
  %v234 = vadd.f32 %v232, %v233
  %v235 = vrot.slane %v234, 1
  %v236 = vadd.f32 %v234, %v235
  %237 = vst.msk [vmem:[%s9] sm:$0x1] %vm224, %v236
  // Predicated region
  $region30: #{tst_encoder_layer.4} parent=0 // pred_check
    _
  $region31: #{tst_encoder_layer.4} parent=0 // pred_check_branch
    %239 = sbr.rel (0) target = $region33
  $region32: #{tst_encoder_layer.4} parent=0 // pred_region
    _
  $region33: #{tst_encoder_layer.4} parent=0 // pred_fallthru
    _
  // Predicated region
  $region34: #{tst_encoder_layer.4} parent=0 // pred_check
    _
  $region35: #{tst_encoder_layer.4} parent=0 // pred_check_branch
    %241 = sbr.rel (0) target = $region37
  $region36: #{tst_encoder_layer.4} parent=0 // pred_region
    _
  $region37: #{tst_encoder_layer.4} parent=0 // pred_fallthru
    _
  // Predicated region
  $region38: #{tst_encoder_layer.4} parent=0 // pred_check
    _
  $region39: #{tst_encoder_layer.4} parent=0 // pred_check_branch
    %243 = sbr.rel (0) target = $region41
  $region40: #{tst_encoder_layer.4} parent=0 // pred_region
    _
  $region41: #{tst_encoder_layer.4} parent=0 // pred_fallthru
    _
  // Predicated region
  $region42: #{tst_encoder_layer.4} parent=0 // pred_check
    _
  $region43: #{tst_encoder_layer.4} parent=0 // pred_check_branch
    %245 = sbr.rel (0) target = $region45
  $region44: #{tst_encoder_layer.4} parent=0 // pred_region
    _
  $region45: #{tst_encoder_layer.4} parent=0 // pred_fallthru
    _
  // Predicated region
  $region46: #{tst_encoder_layer.4} parent=0 // pred_check
    _
  $region47: #{tst_encoder_layer.4} parent=0 // pred_check_branch
    %247 = sbr.rel (0) target = $region49
  $region48: #{tst_encoder_layer.4} parent=0 // pred_region
    _
  $region49: #{tst_encoder_layer.4} parent=0 // pred_fallthru
    _
  // Predicated region
  $region50: #{tst_encoder_layer.4} parent=0 // pred_check
    _
  $region51: #{tst_encoder_layer.4} parent=0 // pred_check_branch
    %249 = sbr.rel (0) target = $region53
  $region52: #{tst_encoder_layer.4} parent=0 // pred_region
    _
  $region53: #{tst_encoder_layer.4} parent=0 // pred_fallthru
    _

// kernel: tst_encoder_layer.3
$region0: #{tst_encoder_layer.3}
  #allocation0 [shape = 'u32[]', space=smem, size = 0x4, offset = 0x4, fixed_abs, tag = 'smem constant byte address 0x4 - core index']
  #allocation1 [shape = 'u32[72,128]{1,0:T(1,128)}', space=vmem, size = 0x9000, scoped, tag = 'internal scratch']
  #allocation2 [shape = 'f32[8,96]{1,0:T(8,128)}', space=vmem, size = 0x1000, scoped, tag = 'scratch operand']
  %s0 = inlined_call_operand.vmem [shape: f32[2,8,32], index: 0, kind: input, shape index: {}]
  %s1 = inlined_call_operand.vmem [shape: f32[32,96], index: 1, kind: input, shape index: {}]
  %s2 = inlined_call_operand.vmem [shape: f32[1,96], index: 2, kind: input, shape index: {}]
  %s3 = inlined_call_operand.vmem [shape: f32[32,32], index: 3, kind: input, shape index: {}]
  %s4 = inlined_call_operand.vmem [shape: f32[1,32], index: 4, kind: input, shape index: {}]
  %s5 = inlined_call_operand.vmem [shape: f32[2,8,32], index: 5, kind: output, shape index: {0}]
  %s6 = inlined_call_operand.vmem [shape: f32[2,1,32], index: 6, kind: output, shape index: {1}]
  %s7 = inlined_call_operand.vmem [shape: f32[2,1,32], index: 7, kind: output, shape index: {2}]
  %8 = xla_tuple %s5, %s6, %s7
  %s9 = sld [smem:[#allocation0]]
  $region69: #{tst_encoder_layer.3} parent=0
    _
  %s11 = ssub.s32 1, %s9
  %s12 = scalar_select 0, %s11, %s9
  loop: start=0, step=1, limit=4
  $region2: #{tst_encoder_layer.3} parent=0 // loop_pre_header
    _
  $region3: #{tst_encoder_layer.3} parent=0 // loop_header
    %s14 = sphi 0, %s18
    %p15 = scmp.ge.s32.totalorder %s14, 4
    %s24 = sphi 0, %s26
    %s27 = sphi 0, %s24
    %s28 = sphi 0, %s27
    %s44 = sphi 0, %s28
    %s48 = sphi 0, %s48
    %s50 = sphi 0, %s48
    %s51 = sphi 0, %s50
    %s65 = sphi 0, %s51
    %s69 = sphi 0, %s69
    %s71 = sphi 0, %s69
    %s72 = sphi 0, %s71
    %s86 = sphi 0, %s72
    %s90 = sphi 0, %s90
    %s92 = sphi 0, %s90
    %s93 = sphi 0, %s92
    %s107 = sphi 0, %s93
    %s111 = sphi 0, %s111
    %s113 = sphi 0, %s111
    %s114 = sphi 0, %s113
    %s128 = sphi 0, %s114
    %s134 = sphi 0, %s136
    %s137 = sphi 0, %s134
    %s138 = sphi 0, %s137
    %s154 = sphi 0, %s138
    %s160 = sphi 0, %s162
    %s163 = sphi 0, %s160
    %s164 = sphi 0, %s163
    %s180 = sphi 0, %s164
    %s186 = sphi 0, %s188
    %s189 = sphi 0, %s186
    %s190 = sphi 0, %s189
    %s206 = sphi 0, %s190
  $region4: #{tst_encoder_layer.3} parent=0 // loop_header_branch
    %17 = sbr.rel (%p15) target = $region8
  $region5: #{tst_encoder_layer.3} parent=0 // loop_body
    %s19 = ssub.s32 %s14, 1
    %s20 = ssub.s32 %s14, 2
    %s21 = sadd.s32 %s14, 1
    %s22 = ssub.s32 %s14, %s21
    %p23 = scmp.eq.s32.totalorder %s22, 0
    %s25 = sadd.s32 %s24, 1
    %s26 = scalar_select %p23, %s24, %s25
    %p29 = pneg %p23
    %p30 = scmp.eq.s32.totalorder %s14, 1
    %p31 = por %p29, %p30
    %p32 = scmp.ne.s32.totalorder %s24, %s27
    %p33 = scmp.eq.s32.totalorder %s14, 0
    %p34 = por %p32, %p33
    %p35 = scmp.ne.s32.totalorder %s24, %s27
    %p36 = scmp.eq.s32.totalorder %s19, 1
    %p37 = por %p35, %p36
    %p38 = scmp.ne.s32.totalorder %s27, %s28
    %p39 = scmp.eq.s32.totalorder %s19, 0
    %p40 = por %p38, %p39
    %p41 = scmp.ne.s32.totalorder %s27, %s28
    %p42 = scmp.eq.s32.totalorder %s20, 1
    %p43 = por %p41, %p42
    %p45 = scmp.ne.s32.totalorder %s28, %s44
    %p46 = scmp.eq.s32.totalorder %s20, 0
    %p47 = por %p45, %p46
    %s49 = sadd.s32 %s48, 1
    %p52 = scmp.eq.s32.totalorder %s14, 1
    %p53 = scmp.ne.s32.totalorder %s48, %s50
    %p54 = scmp.eq.s32.totalorder %s14, 0
    %p55 = por %p53, %p54
    %p56 = scmp.ne.s32.totalorder %s48, %s50
    %p57 = scmp.eq.s32.totalorder %s19, 1
    %p58 = por %p56, %p57
    %p59 = scmp.ne.s32.totalorder %s50, %s51
    %p60 = scmp.eq.s32.totalorder %s19, 0
    %p61 = por %p59, %p60
    %p62 = scmp.ne.s32.totalorder %s50, %s51
    %p63 = scmp.eq.s32.totalorder %s20, 1
    %p64 = por %p62, %p63
    %p66 = scmp.ne.s32.totalorder %s51, %s65
    %p67 = scmp.eq.s32.totalorder %s20, 0
    %p68 = por %p66, %p67
    %s70 = sadd.s32 %s69, 1
    %p73 = scmp.eq.s32.totalorder %s14, 1
    %p74 = scmp.ne.s32.totalorder %s69, %s71
    %p75 = scmp.eq.s32.totalorder %s14, 0
    %p76 = por %p74, %p75
    %p77 = scmp.ne.s32.totalorder %s69, %s71
    %p78 = scmp.eq.s32.totalorder %s19, 1
    %p79 = por %p77, %p78
    %p80 = scmp.ne.s32.totalorder %s71, %s72
    %p81 = scmp.eq.s32.totalorder %s19, 0
    %p82 = por %p80, %p81
    %p83 = scmp.ne.s32.totalorder %s71, %s72
    %p84 = scmp.eq.s32.totalorder %s20, 1
    %p85 = por %p83, %p84
    %p87 = scmp.ne.s32.totalorder %s72, %s86
    %p88 = scmp.eq.s32.totalorder %s20, 0
    %p89 = por %p87, %p88
    %s91 = sadd.s32 %s90, 1
    %p94 = scmp.eq.s32.totalorder %s14, 1
    %p95 = scmp.ne.s32.totalorder %s90, %s92
    %p96 = scmp.eq.s32.totalorder %s14, 0
    %p97 = por %p95, %p96
    %p98 = scmp.ne.s32.totalorder %s90, %s92
    %p99 = scmp.eq.s32.totalorder %s19, 1
    %p100 = por %p98, %p99
    %p101 = scmp.ne.s32.totalorder %s92, %s93
    %p102 = scmp.eq.s32.totalorder %s19, 0
    %p103 = por %p101, %p102
    %p104 = scmp.ne.s32.totalorder %s92, %s93
    %p105 = scmp.eq.s32.totalorder %s20, 1
    %p106 = por %p104, %p105
    %p108 = scmp.ne.s32.totalorder %s93, %s107
    %p109 = scmp.eq.s32.totalorder %s20, 0
    %p110 = por %p108, %p109
    %s112 = sadd.s32 %s111, 1
    %p115 = scmp.eq.s32.totalorder %s14, 1
    %p116 = scmp.ne.s32.totalorder %s111, %s113
    %p117 = scmp.eq.s32.totalorder %s14, 0
    %p118 = por %p116, %p117
    %p119 = scmp.ne.s32.totalorder %s111, %s113
    %p120 = scmp.eq.s32.totalorder %s19, 1
    %p121 = por %p119, %p120
    %p122 = scmp.ne.s32.totalorder %s113, %s114
    %p123 = scmp.eq.s32.totalorder %s19, 0
    %p124 = por %p122, %p123
    %p125 = scmp.ne.s32.totalorder %s113, %s114
    %p126 = scmp.eq.s32.totalorder %s20, 1
    %p127 = por %p125, %p126
    %p129 = scmp.ne.s32.totalorder %s114, %s128
    %p130 = scmp.eq.s32.totalorder %s20, 0
    %p131 = por %p129, %p130
    %s132 = ssub.s32 %s14, %s21
    %p133 = scmp.eq.s32.totalorder %s132, 0
    %s135 = sadd.s32 %s134, 1
    %s136 = scalar_select %p133, %s134, %s135
    %p139 = pneg %p133
    %p140 = scmp.eq.s32.totalorder %s14, 1
    %p141 = por %p139, %p140
    %p142 = scmp.ne.s32.totalorder %s134, %s137
    %p143 = scmp.eq.s32.totalorder %s14, 0
    %p144 = por %p142, %p143
    %p145 = scmp.ne.s32.totalorder %s134, %s137
    %p146 = scmp.eq.s32.totalorder %s19, 1
    %p147 = por %p145, %p146
    %p148 = scmp.ne.s32.totalorder %s137, %s138
    %p149 = scmp.eq.s32.totalorder %s19, 0
    %p150 = por %p148, %p149
    %p151 = scmp.ne.s32.totalorder %s137, %s138
    %p152 = scmp.eq.s32.totalorder %s20, 1
    %p153 = por %p151, %p152
    %p155 = scmp.ne.s32.totalorder %s138, %s154
    %p156 = scmp.eq.s32.totalorder %s20, 0
    %p157 = por %p155, %p156
    %s158 = ssub.s32 %s14, %s21
    %p159 = scmp.eq.s32.totalorder %s158, 0
    %s161 = sadd.s32 %s160, 1
    %s162 = scalar_select %p159, %s160, %s161
    %p165 = pneg %p159
    %p166 = scmp.eq.s32.totalorder %s14, 1
    %p167 = por %p165, %p166
    %p168 = scmp.ne.s32.totalorder %s160, %s163
    %p169 = scmp.eq.s32.totalorder %s14, 0
    %p170 = por %p168, %p169
    %p171 = scmp.ne.s32.totalorder %s160, %s163
    %p172 = scmp.eq.s32.totalorder %s19, 1
    %p173 = por %p171, %p172
    %p174 = scmp.ne.s32.totalorder %s163, %s164
    %p175 = scmp.eq.s32.totalorder %s19, 0
    %p176 = por %p174, %p175
    %p177 = scmp.ne.s32.totalorder %s163, %s164
    %p178 = scmp.eq.s32.totalorder %s20, 1
    %p179 = por %p177, %p178
    %p181 = scmp.ne.s32.totalorder %s164, %s180
    %p182 = scmp.eq.s32.totalorder %s20, 0
    %p183 = por %p181, %p182
    %s184 = ssub.s32 %s14, %s21
    %p185 = scmp.eq.s32.totalorder %s184, 0
    %s187 = sadd.s32 %s186, 1
    %s188 = scalar_select %p185, %s186, %s187
    %p191 = pneg %p185
    %p192 = scmp.eq.s32.totalorder %s14, 1
    %p193 = por %p191, %p192
    %p194 = scmp.ne.s32.totalorder %s186, %s189
    %p195 = scmp.eq.s32.totalorder %s14, 0
    %p196 = por %p194, %p195
    %p197 = scmp.ne.s32.totalorder %s186, %s189
    %p198 = scmp.eq.s32.totalorder %s19, 1
    %p199 = por %p197, %p198
    %p200 = scmp.ne.s32.totalorder %s189, %s190
    %p201 = scmp.eq.s32.totalorder %s19, 0
    %p202 = por %p200, %p201
    %p203 = scmp.ne.s32.totalorder %s189, %s190
    %p204 = scmp.eq.s32.totalorder %s20, 1
    %p205 = por %p203, %p204
    %p207 = scmp.ne.s32.totalorder %s190, %s206
    %p208 = scmp.eq.s32.totalorder %s20, 0
    %p209 = por %p207, %p208
    %p210 = scmp.le.s32.totalorder 1, %s14
    %p211 = scmp.lt.s32.totalorder %s14, 3
    %p212 = pnand %p210, %p211
    %p213 = pneg %p212
    // Predicated region
    $region9: #{tst_encoder_layer.3} parent=5 // pred_check
      _
    $region10: #{tst_encoder_layer.3} parent=5 // pred_check_branch
      %215 = sbr.rel (%p212) target = $region12
    $region11: #{tst_encoder_layer.3} parent=5 // pred_region
      %s216 = ssub.s32 %s14, 1
      // Predicated region
      $region13: #{tst_encoder_layer.3} parent=11 // pred_check
        %p217 = pneg %p61
      $region14: #{tst_encoder_layer.3} parent=11 // pred_check_branch
        %219 = sbr.rel (%p217) target = $region16
      $region15: #{tst_encoder_layer.3} parent=11 // pred_region
        _
      $region16: #{tst_encoder_layer.3} parent=11 // pred_fallthru
        _
      // Predicated region
      $region17: #{tst_encoder_layer.3} parent=11 // pred_check
        %p220 = pneg %p82
      $region18: #{tst_encoder_layer.3} parent=11 // pred_check_branch
        %222 = sbr.rel (%p220) target = $region20
      $region19: #{tst_encoder_layer.3} parent=11 // pred_region
        _
      $region20: #{tst_encoder_layer.3} parent=11 // pred_fallthru
        _
      // Predicated region
      $region21: #{tst_encoder_layer.3} parent=11 // pred_check
        %p223 = pneg %p103
      $region22: #{tst_encoder_layer.3} parent=11 // pred_check_branch
        %225 = sbr.rel (%p223) target = $region24
      $region23: #{tst_encoder_layer.3} parent=11 // pred_region
        _
      $region24: #{tst_encoder_layer.3} parent=11 // pred_fallthru
        _
      // Predicated region
      $region25: #{tst_encoder_layer.3} parent=11 // pred_check
        %p226 = pneg %p124
      $region26: #{tst_encoder_layer.3} parent=11 // pred_check_branch
        %228 = sbr.rel (%p226) target = $region28
      $region27: #{tst_encoder_layer.3} parent=11 // pred_region
        _
      $region28: #{tst_encoder_layer.3} parent=11 // pred_fallthru
        _
    $region12: #{tst_encoder_layer.3} parent=5 // pred_fallthru
      _
    %p229 = scmp.lt.s32.totalorder %s14, 2
    // Predicated region
    $region29: #{tst_encoder_layer.3} parent=5 // pred_check
      %p230 = pneg %p229
    $region30: #{tst_encoder_layer.3} parent=5 // pred_check_branch
      %232 = sbr.rel (%p230) target = $region32
    $region31: #{tst_encoder_layer.3} parent=5 // pred_region
      // Predicated region
      $region33: #{tst_encoder_layer.3} parent=31 // pred_check
        %p233 = pneg %p34
      $region34: #{tst_encoder_layer.3} parent=31 // pred_check_branch
        %235 = sbr.rel (%p233) target = $region36
      $region35: #{tst_encoder_layer.3} parent=31 // pred_region
        %p236 = scmp.lt.s32.totalorder %s14, 1
        %s237 = scalar_select %p236, %s14, 1
        %s238 = smul.addr %s237, 8
        %s239 = scalar_lea.vmem %s0, %s238
      $region36: #{tst_encoder_layer.3} parent=31 // pred_fallthru
        _
    $region32: #{tst_encoder_layer.3} parent=5 // pred_fallthru
      _
    %p240 = scmp.le.s32.totalorder 1, %s14
    %p241 = scmp.lt.s32.totalorder %s14, 3
    %p242 = pnand %p240, %p241
    %p243 = pneg %p242
    // Predicated region
    $region37: #{tst_encoder_layer.3} parent=5 // pred_check
      _
    $region38: #{tst_encoder_layer.3} parent=5 // pred_check_branch
      %245 = sbr.rel (%p242) target = $region40
    $region39: #{tst_encoder_layer.3} parent=5 // pred_region
      %s246 = ssub.s32 %s14, 1
      %p247 = scmp.lt.s32.totalorder %s19, 1
      %s248 = scalar_select %p247, %s19, 1
      %s249 = smul.addr %s248, 8
      %s250 = scalar_lea.vmem %s0, %s249
      %p251 = pneg %p40
      %p252 = pneg %p37
      %p253 = pneg %p61
      %p254 = pneg %p58
      %p255 = pneg %p82
      %p256 = pneg %p79
      %p257 = pneg %p103
      %p258 = pneg %p100
      %p259 = pneg %p124
      %p260 = pneg %p121
      %p261 = pneg %p150
      %p262 = pneg %p147
      %p263 = scmp.lt.s32.totalorder %s19, 1
      %s264 = scalar_select %p263, %s19, 1
      %s265 = smul.addr %s264, 8
      %s266 = scalar_lea.vmem %s5, %s265
      %p267 = pneg %p176
      %p268 = pneg %p173
      %p269 = scmp.lt.s32.totalorder %s19, 1
      %s270 = scalar_select %p269, %s19, 1
      %s271 = scalar_lea.vmem %s6, %s270
      %p272 = pneg %p202
      %p273 = pneg %p199
      %p274 = scmp.lt.s32.totalorder %s19, 1
      %s275 = scalar_select %p274, %s19, 1
      %s276 = scalar_lea.vmem %s7, %s275
      %p277 = scmp.lt.s32.totalorder %s19, 1
      %s278 = scalar_select %p277, %s19, 1
      %s279 = smul.addr %s278, 8
      %s280 = scalar_lea.vmem %s0, %s279
      %p281 = scmp.lt.s32.totalorder %s19, 1
      %s282 = scalar_select %p281, %s19, 1
      %s283 = smul.addr %s282, 8
      %s284 = scalar_lea.vmem %s5, %s283
      %p285 = scmp.lt.s32.totalorder %s19, 1
      %s286 = scalar_select %p285, %s19, 1
      %s287 = scalar_lea.vmem %s6, %s286
      %p288 = scmp.lt.s32.totalorder %s19, 1
      %s289 = scalar_select %p288, %s19, 1
      %s290 = scalar_lea.vmem %s7, %s289
      %v291 = vld [vmem:[%s280] sm:$0xff]
      %v292 = vld [vmem:[%s1] sm:$0xff]
      %v293 = vld [vmem:[%s1 + $0x8] sm:$0xff]
      %v294 = vld [vmem:[%s1 + $0x10] sm:$0xff]
      %v295 = vld [vmem:[%s1 + $0x18] sm:$0xff]
      %v296 = vld [vmem:[%s2] sm:$0x1]
      %v298 = vperm.slane %v296, 0
      %vm300 = vcmask 261120
      %v302 = vsel %vm300, %v291, 0
      %304 = vmatpush.msra.mxu0 0.0
      %305 = vmatpush.msra.mxu0 0.0
      %306 = vmatpush.msra.mxu0 0.0
      %307 = vmatpush.msra.mxu0 0.0
      %308 = vmatpush.msra.mxu0 0.0
      %309 = vmatpush.msra.mxu0 0.0
      %310 = vmatpush.msra.mxu0 0.0
      %311 = vmatpush.msra.mxu0 0.0
      %312 = vmatpush.msra.mxu0 0.0
      %313 = vmatpush.msra.mxu0 0.0
      %314 = vmatpush.msra.mxu0 0.0
      %315 = vmatpush.msra.mxu0 0.0
      %316 = vmatpush.msra.mxu0 %v295
      %317 = vmatpush.msra.mxu0 %v294
      %318 = vmatpush.msra.mxu0 %v293
      %319 = vmatpush.msra.mxu0 %v292
      %320 = vmatmul.f32.gmra.mxu0 %v302
      %v321 = vpop.f32.mrf.mxu0
      %v322 = vadd.f32 %v298, %v321
      %323 = vdwg.mxu0
      %vm324 = vcmask 785408
      %325 = vst.msk [vmem:[#allocation2] sm:$0xff] %vm324, %v322
      %v326 = vld [vmem:[#allocation2] sm:$0xff]
      %328 = vrot.lane.b32.xlu0 %v326, 96
      %v329 = vpop.permute.xlu0 %328
      %vm330 = vcmask 64512
      %v331 = vsel %vm330, %v326, 0
      %v333 = vsel %vm330, %v329, 0
      %335 = vmatpush.xpose.msra.mxu0 0.0
      %336 = vmatpush.xpose.msra.mxu0 0.0
      %337 = vmatpush.xpose.msra.mxu0 0.0
      %338 = vmatpush.xpose.msra.mxu0 0.0
      %339 = vmatpush.xpose.msra.mxu0 0.0
      %340 = vmatpush.xpose.msra.mxu0 0.0
      %341 = vmatpush.xpose.msra.mxu0 0.0
      %342 = vmatpush.xpose.msra.mxu0 0.0
      %343 = vmatpush.xpose.msra.mxu0 0.0
      %344 = vmatpush.xpose.msra.mxu0 0.0
      %345 = vmatpush.xpose.msra.mxu0 0.0
      %346 = vmatpush.xpose.msra.mxu0 0.0
      %347 = vmatpush.xpose.msra.mxu0 0.0
      %348 = vmatpush.xpose.msra.mxu0 0.0
      %349 = vmatpush.xpose.msra.mxu0 0.0
      %350 = vmatpush.xpose.msra.mxu0 %v333
      %351 = vmatmul.f32.gmra.mxu0 %v331
      %v352 = vpop.f32.mrf.mxu0
      %v353 = vadd.f32 0.0, %v352
      %354 = vdwg.mxu0
      %v355 = vsel %vm330, %v353, -inf
      %356 = vmax.xlane.f32.xlu0 %v355
      %v357 = vpop.xlane.xlu0 %356
      %v358 = vsub.f32 %v353, %v357
      %v359 = vmul.f32 %v358, 1.442695
      %v360 = vpow.pop %v359
      %v361 = vsel %vm330, %v360, 0.0
      %362 = vadd.xlane.f32.xlu0 %v361
      %v363 = vpop.xlane.xlu0 %362
      %v364 = vrcp.pop %v363
      %v365 = vmul.f32 %v363, %v364
      %v366 = vsub.f32 1.0, %v365
      %v367 = vmul.f32 %v364, %v366
      %v368 = vadd.f32 %v364, %v367
      %vm369 = vweird.f32 %v363
      %vm370 = vweird.f32 %v364
      %vm371 = vmor %vm369, %vm370
      %v372 = vsel %vm371, %v364, %v368
      %v373 = vand.u32 2147483647, %v363
      %vm374 = vcmp.eq.f32.partialorder %v373, 8.507059e+37
      %v375 = vand.u32 %v363, 2147483648
      %v376 = vor.u32 1.1754944e-38, %v375
      %v377 = vsel %vm374, %v376, %v372
      %v378 = vmul.f32 %v360, %v377
      %379 = vrot.lane.b32.xlu0 %v326, 64
      %v380 = vpop.permute.xlu0 %379
      %v383 = vsel %vm330, %v378, 0
      %385 = vmatpush.msra.mxu0 0.0
      %386 = vmatpush.msra.mxu0 0.0
      %387 = vmatpush.msra.mxu0 0.0
      %388 = vmatpush.msra.mxu0 0.0
      %389 = vmatpush.msra.mxu0 0.0
      %390 = vmatpush.msra.mxu0 0.0
      %391 = vmatpush.msra.mxu0 0.0
      %392 = vmatpush.msra.mxu0 0.0
      %393 = vmatpush.msra.mxu0 0.0
      %394 = vmatpush.msra.mxu0 0.0
      %395 = vmatpush.msra.mxu0 0.0
      %396 = vmatpush.msra.mxu0 0.0
      %397 = vmatpush.msra.mxu0 0.0
      %398 = vmatpush.msra.mxu0 0.0
      %399 = vmatpush.msra.mxu0 0.0
      %400 = vmatpush.msra.mxu0 %v380
      %401 = vmatmul.f32.gmra.mxu0 %v383
      %v402 = vpop.f32.mrf.mxu0
      %v403 = vadd.f32 0.0, %v402
      %404 = vdwg.mxu0
      %405 = vrot.lane.b32.xlu0 %v326, 120
      %v406 = vpop.permute.xlu0 %405
      %407 = vrot.lane.b32.xlu0 %v326, 88
      %v408 = vpop.permute.xlu0 %407
      %v409 = vsel %vm330, %v406, 0
      %v411 = vsel %vm330, %v408, 0
      %413 = vmatpush.xpose.msra.mxu0 0.0
      %414 = vmatpush.xpose.msra.mxu0 0.0
      %415 = vmatpush.xpose.msra.mxu0 0.0
      %416 = vmatpush.xpose.msra.mxu0 0.0
      %417 = vmatpush.xpose.msra.mxu0 0.0
      %418 = vmatpush.xpose.msra.mxu0 0.0
      %419 = vmatpush.xpose.msra.mxu0 0.0
      %420 = vmatpush.xpose.msra.mxu0 0.0
      %421 = vmatpush.xpose.msra.mxu0 0.0
      %422 = vmatpush.xpose.msra.mxu0 0.0
      %423 = vmatpush.xpose.msra.mxu0 0.0
      %424 = vmatpush.xpose.msra.mxu0 0.0
      %425 = vmatpush.xpose.msra.mxu0 0.0
      %426 = vmatpush.xpose.msra.mxu0 0.0
      %427 = vmatpush.xpose.msra.mxu0 0.0
      %428 = vmatpush.xpose.msra.mxu0 %v411
      %429 = vmatmul.f32.gmra.mxu0 %v409
      %v430 = vpop.f32.mrf.mxu0
      %v431 = vadd.f32 0.0, %v430
      %432 = vdwg.mxu0
      %v433 = vsel %vm330, %v431, -inf
      %434 = vmax.xlane.f32.xlu0 %v433
      %v435 = vpop.xlane.xlu0 %434
      %v436 = vsub.f32 %v431, %v435
      %v437 = vmul.f32 %v436, 1.442695
      %v438 = vpow.pop %v437
      %v439 = vsel %vm330, %v438, 0.0
      %440 = vadd.xlane.f32.xlu0 %v439
      %v441 = vpop.xlane.xlu0 %440
      %v442 = vrcp.pop %v441
      %v443 = vmul.f32 %v441, %v442
      %v444 = vsub.f32 1.0, %v443
      %v445 = vmul.f32 %v442, %v444
      %v446 = vadd.f32 %v442, %v445
      %vm447 = vweird.f32 %v441
      %vm448 = vweird.f32 %v442
      %vm449 = vmor %vm447, %vm448
      %v450 = vsel %vm449, %v442, %v446
      %v451 = vand.u32 2147483647, %v441
      %vm452 = vcmp.eq.f32.partialorder %v451, 8.507059e+37
      %v453 = vand.u32 %v441, 2147483648
      %v454 = vor.u32 1.1754944e-38, %v453
      %v455 = vsel %vm452, %v454, %v450
      %v456 = vmul.f32 %v438, %v455
      %457 = vrot.lane.b32.xlu0 %v326, 56
      %v458 = vpop.permute.xlu0 %457
      %v461 = vsel %vm330, %v456, 0
      %463 = vmatpush.msra.mxu0 0.0
      %464 = vmatpush.msra.mxu0 0.0
      %465 = vmatpush.msra.mxu0 0.0
      %466 = vmatpush.msra.mxu0 0.0
      %467 = vmatpush.msra.mxu0 0.0
      %468 = vmatpush.msra.mxu0 0.0
      %469 = vmatpush.msra.mxu0 0.0
      %470 = vmatpush.msra.mxu0 0.0
      %471 = vmatpush.msra.mxu0 0.0
      %472 = vmatpush.msra.mxu0 0.0
      %473 = vmatpush.msra.mxu0 0.0
      %474 = vmatpush.msra.mxu0 0.0
      %475 = vmatpush.msra.mxu0 0.0
      %476 = vmatpush.msra.mxu0 0.0
      %477 = vmatpush.msra.mxu0 0.0
      %478 = vmatpush.msra.mxu0 %v458
      %479 = vmatmul.f32.gmra.mxu0 %v461
      %v480 = vpop.f32.mrf.mxu0
      %v481 = vadd.f32 0.0, %v480
      %482 = vdwg.mxu0
      %483 = vrot.lane.b32.xlu0 %v326, 112
      %v484 = vpop.permute.xlu0 %483
      %485 = vrot.lane.b32.xlu0 %v326, 80
      %v486 = vpop.permute.xlu0 %485
      %v487 = vsel %vm330, %v484, 0
      %v489 = vsel %vm330, %v486, 0
      %491 = vmatpush.xpose.msra.mxu0 0.0
      %492 = vmatpush.xpose.msra.mxu0 0.0
      %493 = vmatpush.xpose.msra.mxu0 0.0
      %494 = vmatpush.xpose.msra.mxu0 0.0
      %495 = vmatpush.xpose.msra.mxu0 0.0
      %496 = vmatpush.xpose.msra.mxu0 0.0
      %497 = vmatpush.xpose.msra.mxu0 0.0
      %498 = vmatpush.xpose.msra.mxu0 0.0
      %499 = vmatpush.xpose.msra.mxu0 0.0
      %500 = vmatpush.xpose.msra.mxu0 0.0
      %501 = vmatpush.xpose.msra.mxu0 0.0
      %502 = vmatpush.xpose.msra.mxu0 0.0
      %503 = vmatpush.xpose.msra.mxu0 0.0
      %504 = vmatpush.xpose.msra.mxu0 0.0
      %505 = vmatpush.xpose.msra.mxu0 0.0
      %506 = vmatpush.xpose.msra.mxu0 %v489
      %507 = vmatmul.f32.gmra.mxu0 %v487
      %v508 = vpop.f32.mrf.mxu0
      %v509 = vadd.f32 0.0, %v508
      %510 = vdwg.mxu0
      %v511 = vsel %vm330, %v509, -inf
      %512 = vmax.xlane.f32.xlu0 %v511
      %v513 = vpop.xlane.xlu0 %512
      %v514 = vsub.f32 %v509, %v513
      %v515 = vmul.f32 %v514, 1.442695
      %v516 = vpow.pop %v515
      %v517 = vsel %vm330, %v516, 0.0
      %518 = vadd.xlane.f32.xlu0 %v517
      %v519 = vpop.xlane.xlu0 %518
      %v520 = vrcp.pop %v519
      %v521 = vmul.f32 %v519, %v520
      %v522 = vsub.f32 1.0, %v521
      %v523 = vmul.f32 %v520, %v522
      %v524 = vadd.f32 %v520, %v523
      %vm525 = vweird.f32 %v519
      %vm526 = vweird.f32 %v520
      %vm527 = vmor %vm525, %vm526
      %v528 = vsel %vm527, %v520, %v524
      %v529 = vand.u32 2147483647, %v519
      %vm530 = vcmp.eq.f32.partialorder %v529, 8.507059e+37
      %v531 = vand.u32 %v519, 2147483648
      %v532 = vor.u32 1.1754944e-38, %v531
      %v533 = vsel %vm530, %v532, %v528
      %v534 = vmul.f32 %v516, %v533
      %535 = vrot.lane.b32.xlu0 %v326, 48
      %v536 = vpop.permute.xlu0 %535
      %v539 = vsel %vm330, %v534, 0
      %541 = vmatpush.msra.mxu0 0.0
      %542 = vmatpush.msra.mxu0 0.0
      %543 = vmatpush.msra.mxu0 0.0
      %544 = vmatpush.msra.mxu0 0.0
      %545 = vmatpush.msra.mxu0 0.0
      %546 = vmatpush.msra.mxu0 0.0
      %547 = vmatpush.msra.mxu0 0.0
      %548 = vmatpush.msra.mxu0 0.0
      %549 = vmatpush.msra.mxu0 0.0
      %550 = vmatpush.msra.mxu0 0.0
      %551 = vmatpush.msra.mxu0 0.0
      %552 = vmatpush.msra.mxu0 0.0
      %553 = vmatpush.msra.mxu0 0.0
      %554 = vmatpush.msra.mxu0 0.0
      %555 = vmatpush.msra.mxu0 0.0
      %556 = vmatpush.msra.mxu0 %v536
      %557 = vmatmul.f32.gmra.mxu0 %v539
      %v558 = vpop.f32.mrf.mxu0
      %v559 = vadd.f32 0.0, %v558
      %560 = vdwg.mxu0
      %561 = vrot.lane.b32.xlu0 %v326, 104
      %v562 = vpop.permute.xlu0 %561
      %563 = vrot.lane.b32.xlu0 %v326, 72
      %v564 = vpop.permute.xlu0 %563
      %v565 = vsel %vm330, %v562, 0
      %v567 = vsel %vm330, %v564, 0
      %569 = vmatpush.xpose.msra.mxu0 0.0
      %570 = vmatpush.xpose.msra.mxu0 0.0
      %571 = vmatpush.xpose.msra.mxu0 0.0
      %572 = vmatpush.xpose.msra.mxu0 0.0
      %573 = vmatpush.xpose.msra.mxu0 0.0
      %574 = vmatpush.xpose.msra.mxu0 0.0
      %575 = vmatpush.xpose.msra.mxu0 0.0
      %576 = vmatpush.xpose.msra.mxu0 0.0
      %577 = vmatpush.xpose.msra.mxu0 0.0
      %578 = vmatpush.xpose.msra.mxu0 0.0
      %579 = vmatpush.xpose.msra.mxu0 0.0
      %580 = vmatpush.xpose.msra.mxu0 0.0
      %581 = vmatpush.xpose.msra.mxu0 0.0
      %582 = vmatpush.xpose.msra.mxu0 0.0
      %583 = vmatpush.xpose.msra.mxu0 0.0
      %584 = vmatpush.xpose.msra.mxu0 %v567
      %585 = vmatmul.f32.gmra.mxu0 %v565
      %v586 = vpop.f32.mrf.mxu0
      %v587 = vadd.f32 0.0, %v586
      %588 = vdwg.mxu0
      %v589 = vsel %vm330, %v587, -inf
      %590 = vmax.xlane.f32.xlu0 %v589
      %v591 = vpop.xlane.xlu0 %590
      %v592 = vsub.f32 %v587, %v591
      %v593 = vmul.f32 %v592, 1.442695
      %v594 = vpow.pop %v593
      %v595 = vsel %vm330, %v594, 0.0
      %596 = vadd.xlane.f32.xlu0 %v595
      %v597 = vpop.xlane.xlu0 %596
      %v598 = vrcp.pop %v597
      %v599 = vmul.f32 %v597, %v598
      %v600 = vsub.f32 1.0, %v599
      %v601 = vmul.f32 %v598, %v600
      %v602 = vadd.f32 %v598, %v601
      %vm603 = vweird.f32 %v597
      %vm604 = vweird.f32 %v598
      %vm605 = vmor %vm603, %vm604
      %v606 = vsel %vm605, %v598, %v602
      %v607 = vand.u32 2147483647, %v597
      %vm608 = vcmp.eq.f32.partialorder %v607, 8.507059e+37
      %v609 = vand.u32 %v597, 2147483648
      %v610 = vor.u32 1.1754944e-38, %v609
      %v611 = vsel %vm608, %v610, %v606
      %v612 = vmul.f32 %v594, %v611
      %613 = vrot.lane.b32.xlu0 %v326, 40
      %v614 = vpop.permute.xlu0 %613
      %v617 = vsel %vm330, %v612, 0
      %619 = vmatpush.msra.mxu0 0.0
      %620 = vmatpush.msra.mxu0 0.0
      %621 = vmatpush.msra.mxu0 0.0
      %622 = vmatpush.msra.mxu0 0.0
      %623 = vmatpush.msra.mxu0 0.0
      %624 = vmatpush.msra.mxu0 0.0
      %625 = vmatpush.msra.mxu0 0.0
      %626 = vmatpush.msra.mxu0 0.0
      %627 = vmatpush.msra.mxu0 0.0
      %628 = vmatpush.msra.mxu0 0.0
      %629 = vmatpush.msra.mxu0 0.0
      %630 = vmatpush.msra.mxu0 0.0
      %631 = vmatpush.msra.mxu0 0.0
      %632 = vmatpush.msra.mxu0 0.0
      %633 = vmatpush.msra.mxu0 0.0
      %634 = vmatpush.msra.mxu0 %v614
      %635 = vmatmul.f32.gmra.mxu0 %v617
      %v636 = vpop.f32.mrf.mxu0
      %v637 = vadd.f32 0.0, %v636
      %638 = vdwg.mxu0
      %640 = vrot.lane.b32.xlu0 %v481, 8
      %v641 = vpop.permute.xlu0 %640
      %644 = vrot.lane.b32.xlu0 %v559, 16
      %v645 = vpop.permute.xlu0 %644
      %648 = vrot.lane.b32.xlu0 %v637, 24
      %v649 = vpop.permute.xlu0 %648
      %v651 = vsel %vm330, %v403, %v641
      %vm652 = vcmask 130048
      %v653 = vsel %vm652, %v651, %v645
      %vm654 = vcmask 195584
      %v655 = vsel %vm654, %v653, %v649
      %v656 = vld [vmem:[%s3] sm:$0xff]
      %v657 = vld [vmem:[%s3 + $0x8] sm:$0xff]
      %v658 = vld [vmem:[%s3 + $0x10] sm:$0xff]
      %v659 = vld [vmem:[%s3 + $0x18] sm:$0xff]
      %v661 = vsel %vm300, %v655, 0
      %663 = vmatpush.msra.mxu0 0.0
      %664 = vmatpush.msra.mxu0 0.0
      %665 = vmatpush.msra.mxu0 0.0
      %666 = vmatpush.msra.mxu0 0.0
      %667 = vmatpush.msra.mxu0 0.0
      %668 = vmatpush.msra.mxu0 0.0
      %669 = vmatpush.msra.mxu0 0.0
      %670 = vmatpush.msra.mxu0 0.0
      %671 = vmatpush.msra.mxu0 0.0
      %672 = vmatpush.msra.mxu0 0.0
      %673 = vmatpush.msra.mxu0 0.0
      %674 = vmatpush.msra.mxu0 0.0
      %675 = vmatpush.msra.mxu0 %v659
      %676 = vmatpush.msra.mxu0 %v658
      %677 = vmatpush.msra.mxu0 %v657
      %678 = vmatpush.msra.mxu0 %v656
      %679 = vmatmul.f32.gmra.mxu0 %v661
      %v680 = vpop.f32.mrf.mxu0
      %v681 = vadd.f32 0.0, %v680
      %682 = vdwg.mxu0
      %v683 = vadd.f32 %v291, %v681
      %v684 = vld [vmem:[%s4] sm:$0x1]
      %v686 = vperm.slane %v684, 0
      %v688 = vadd.f32 %v683, %v686
      %689 = vst.msk [vmem:[%s284] sm:$0xff] %vm300, %v688
      %v690 = vsel %vm300, %v688, 0.0
      %v691 = vrot.slane %v690, 4
      %v692 = vadd.f32 %v690, %v691
      %v693 = vrot.slane %v692, 2
      %v694 = vadd.f32 %v692, %v693
      %v695 = vrot.slane %v694, 1
      %v696 = vadd.f32 %v694, %v695
      %vm697 = vcmask 253952
      %698 = vst.msk [vmem:[%s287] sm:$0x1] %vm697, %v696
      %v699 = vmul.f32 %v688, %v688
      %v700 = vsel %vm300, %v699, 0.0
      %v701 = vrot.slane %v700, 4
      %v702 = vadd.f32 %v700, %v701
      %v703 = vrot.slane %v702, 2
      %v704 = vadd.f32 %v702, %v703
      %v705 = vrot.slane %v704, 1
      %v706 = vadd.f32 %v704, %v705
      %707 = vst.msk [vmem:[%s290] sm:$0x1] %vm697, %v706
      %p708 = scmp.lt.s32.totalorder %s19, 1
      %s709 = scalar_select %p708, %s19, 1
      %s710 = smul.addr %s709, 8
      %s711 = scalar_lea.vmem %s5, %s710
      %p712 = scmp.lt.s32.totalorder %s19, 1
      %s713 = scalar_select %p712, %s19, 1
      %s714 = scalar_lea.vmem %s6, %s713
      %p715 = scmp.lt.s32.totalorder %s19, 1
      %s716 = scalar_select %p715, %s19, 1
      %s717 = scalar_lea.vmem %s7, %s716
      // Predicated region
      $region41: #{tst_encoder_layer.3} parent=39 // pred_check
        %p718 = pneg %p147
      $region42: #{tst_encoder_layer.3} parent=39 // pred_check_branch
        %720 = sbr.rel (%p718) target = $region44
      $region43: #{tst_encoder_layer.3} parent=39 // pred_region
        _
      $region44: #{tst_encoder_layer.3} parent=39 // pred_fallthru
        _
      // Predicated region
      $region45: #{tst_encoder_layer.3} parent=39 // pred_check
        %p721 = pneg %p173
      $region46: #{tst_encoder_layer.3} parent=39 // pred_check_branch
        %723 = sbr.rel (%p721) target = $region48
      $region47: #{tst_encoder_layer.3} parent=39 // pred_region
        _
      $region48: #{tst_encoder_layer.3} parent=39 // pred_fallthru
        _
      // Predicated region
      $region49: #{tst_encoder_layer.3} parent=39 // pred_check
        %p724 = pneg %p199
      $region50: #{tst_encoder_layer.3} parent=39 // pred_check_branch
        %726 = sbr.rel (%p724) target = $region52
      $region51: #{tst_encoder_layer.3} parent=39 // pred_region
        _
      $region52: #{tst_encoder_layer.3} parent=39 // pred_fallthru
        _
    $region40: #{tst_encoder_layer.3} parent=5 // pred_fallthru
      _
    %p727 = scmp.le.s32.totalorder 2, %s14
    // Predicated region
    $region53: #{tst_encoder_layer.3} parent=5 // pred_check
      %p728 = pneg %p727
    $region54: #{tst_encoder_layer.3} parent=5 // pred_check_branch
      %730 = sbr.rel (%p728) target = $region56
    $region55: #{tst_encoder_layer.3} parent=5 // pred_region
      %s731 = ssub.s32 %s14, 2
      // Predicated region
      $region57: #{tst_encoder_layer.3} parent=55 // pred_check
        %p732 = pneg %p153
      $region58: #{tst_encoder_layer.3} parent=55 // pred_check_branch
        %734 = sbr.rel (%p732) target = $region60
      $region59: #{tst_encoder_layer.3} parent=55 // pred_region
        %p735 = scmp.lt.s32.totalorder %s20, 1
        %s736 = scalar_select %p735, %s20, 1
        %s737 = smul.addr %s736, 8
        %s738 = scalar_lea.vmem %s5, %s737
      $region60: #{tst_encoder_layer.3} parent=55 // pred_fallthru
        _
      // Predicated region
      $region61: #{tst_encoder_layer.3} parent=55 // pred_check
        %p739 = pneg %p179
      $region62: #{tst_encoder_layer.3} parent=55 // pred_check_branch
        %741 = sbr.rel (%p739) target = $region64
      $region63: #{tst_encoder_layer.3} parent=55 // pred_region
        %p742 = scmp.lt.s32.totalorder %s20, 1
        %s743 = scalar_select %p742, %s20, 1
        %s744 = scalar_lea.vmem %s6, %s743
      $region64: #{tst_encoder_layer.3} parent=55 // pred_fallthru
        _
      // Predicated region
      $region65: #{tst_encoder_layer.3} parent=55 // pred_check
        %p745 = pneg %p205
      $region66: #{tst_encoder_layer.3} parent=55 // pred_check_branch
        %747 = sbr.rel (%p745) target = $region68
      $region67: #{tst_encoder_layer.3} parent=55 // pred_region
        %p748 = scmp.lt.s32.totalorder %s20, 1
        %s749 = scalar_select %p748, %s20, 1
        %s750 = scalar_lea.vmem %s7, %s749
      $region68: #{tst_encoder_layer.3} parent=55 // pred_fallthru
        _
    $region56: #{tst_encoder_layer.3} parent=5 // pred_fallthru
      _
  $region6: #{tst_encoder_layer.3} parent=0 // loop_footer
    %s18 = sadd.s32 1, %s14
  $region7: #{tst_encoder_layer.3} parent=0 // loop_footer_branch
    %13 = sbr.rel target = $region3
  $region8: #{tst_encoder_layer.3} parent=0 // loop_exit
    _

</llo_original>
